<compile_context>
chip_gen: v7x
topology: tpu7x:2x2x1
jax: 0.10.0
libtpu: 0.0.40
codegen_flags: <defaults>
</compile_context>

<pallas_src>
import functools

import jax
import jax.numpy as jnp
from jax.experimental import pallas as pl
from jax.experimental.pallas import tpu as pltpu


# ----------------------------- helpers ---------------------------------------

def _round_up(x, m):
    return (x + m - 1) // m * m


def _pad_last(a, n):
    pad = n - a.shape[-1]
    if pad == 0:
        return a
    cfg = [(0, 0)] * (a.ndim - 1) + [(0, pad)]
    return jnp.pad(a, cfg)


def _fold_bn(gamma, beta, mean, var, eps=1e-5):
    scale = gamma / jnp.sqrt(var + eps)
    return scale, beta - mean * scale


def _im2col_3x3(x_nhwc, stride):
    """3x3, padding=1 patch extraction. Returns [N*Ho*Wo, 9*C], Ho, Wo."""
    N, H, W, C = x_nhwc.shape
    Ho = (H - 1) // stride + 1
    Wo = (W - 1) // stride + 1
    xp = jnp.pad(x_nhwc, ((0, 0), (1, 1), (1, 1), (0, 0)))
    taps = []
    for dy in range(3):
        for dx in range(3):
            taps.append(xp[:, dy:dy + stride * (Ho - 1) + 1:stride,
                            dx:dx + stride * (Wo - 1) + 1:stride, :])
    patches = jnp.concatenate(taps, axis=-1)            # [N, Ho, Wo, 9*C]
    return patches.reshape(N * Ho * Wo, 9 * C), Ho, Wo


# ----------------------------- Pallas kernel ----------------------------------

def _fused_matmul_kernel(*refs, apply_relu, residual_mode):
    # Static variants (no dead operands are ever DMA'd):
    #   "none":   x, w, b, o
    #   "add":    x, w, b, r, o                (identity residual, f32 exact add)
    #   "matmul": x, w, b, r, wr, o            (fused downsample 1x1 conv + bn)
    if residual_mode == "none":
        x_ref, w_ref, b_ref, o_ref = refs
    elif residual_mode == "add":
        x_ref, w_ref, b_ref, r_ref, o_ref = refs
    else:  # "matmul"
        x_ref, w_ref, b_ref, r_ref, wr_ref, o_ref = refs

    out = jnp.dot(x_ref[...], w_ref[...], preferred_element_type=jnp.float32)
    out = out + b_ref[...]                                # folded-BN bias
    if residual_mode == "add":
        out = out + r_ref[...].astype(jnp.float32)
    elif residual_mode == "matmul":
        out = out + jnp.dot(r_ref[...], wr_ref[...],
                            preferred_element_type=jnp.float32)
    if apply_relu:
        out = jnp.maximum(out, 0.0)
    o_ref[...] = out.astype(o_ref.dtype)


def fused_matmul(x, w, b, *, residual=None, residual_w=None, apply_relu,
                 out_dtype=jnp.float32, tile_m=512):
    """maybe_relu(x @ w [+ residual | + residual @ residual_w] + b), tiled over M."""
    M, K = x.shape
    Cout = w.shape[1]
    assert Cout % 128 == 0, "Cout must be lane-padded to a multiple of 128"

    tile = min(tile_m, _round_up(M, 16))
    Mp = _round_up(M, tile)
    if Mp != M:
        x = jnp.pad(x, ((0, Mp - M), (0, 0)))
        if residual is not None:
            residual = jnp.pad(residual, ((0, Mp - M), (0, 0)))

    in_specs = [
        pl.BlockSpec((tile, K), lambda i: (i, 0)),      # activations: tiled over M
        pl.BlockSpec((K, Cout), lambda i: (0, 0)),      # weights: VMEM-resident
        pl.BlockSpec((1, Cout), lambda i: (0, 0)),      # folded-BN bias
    ]
    args = [x, w, b.reshape(1, Cout).astype(jnp.float32)]
    mode = "none"
    if residual is not None:
        Kr = residual.shape[1]
        in_specs.append(pl.BlockSpec((tile, Kr), lambda i: (i, 0)))
        args.append(residual)
        if residual_w is not None:
            in_specs.append(pl.BlockSpec((Kr, Cout), lambda i: (0, 0)))
            args.append(residual_w)
            mode = "matmul"
        else:
            mode = "add"

    out = pl.pallas_call(
        functools.partial(_fused_matmul_kernel, apply_relu=apply_relu,
                          residual_mode=mode),
        out_shape=jax.ShapeDtypeStruct((Mp, Cout), out_dtype),
        grid=(Mp // tile,),
        in_specs=in_specs,
        out_specs=pl.BlockSpec((tile, Cout), lambda i: (i, 0)),
        compiler_params=pltpu.CompilerParams(
            dimension_semantics=("parallel",),        # shards across TCs on v7x
            vmem_limit_bytes=48 * 1024 * 1024),       # headroom under v7x 64 MiB
    )(*args)
    return out[:M] if Mp != M else out


# ------------------------------- forward --------------------------------------

def bottleneck_forward(x_nchw, params, stride):
    """Pallas implementation of BottleneckBlock.forward (BatchNorm eval mode)."""
    eps = 1e-5
    x = jnp.transpose(x_nchw, (0, 2, 3, 1)).astype(jnp.float32)   # NHWC
    N, H, W, Cin = x.shape
    Cmid = params["w1"].shape[0]
    Cexp = params["w3"].shape[0]
    Cmid_p = _round_up(Cmid, 128)
    Cexp_p = _round_up(Cexp, 128)

    # ---- conv1 (1x1) + bn1 + relu : one fused call, BN scale folded into W1 ----
    s1, b1 = _fold_bn(params["g1"], params["b1"], params["m1"], params["v1"], eps)
    w1 = _pad_last(params["w1"][:, :, 0, 0].T * s1[None, :], Cmid_p).astype(jnp.bfloat16)
    out1 = fused_matmul(
        x.reshape(N * H * W, Cin).astype(jnp.bfloat16),
        w1, _pad_last(b1, Cmid_p),
        apply_relu=True, out_dtype=jnp.bfloat16)[:, :Cmid]
    out1 = out1.reshape(N, H, W, Cmid)

    # ---- conv2 (3x3, stride) + bn2 + relu ----
    # TODO(synk): replace the HBM-materialized im2col with in-kernel 9-tap
    # accumulation over a haloed NHWC tile to remove the patch amplification.
    patches, Ho, Wo = _im2col_3x3(out1, stride)                   # bf16 [M2, 9*Cmid]
    M2 = N * Ho * Wo
    s2, b2 = _fold_bn(params["g2"], params["b2"], params["m2"], params["v2"], eps)
    w2 = jnp.transpose(params["w2"], (2, 3, 1, 0)).reshape(9 * Cmid, Cmid) * s2[None, :]
    w2 = _pad_last(w2, Cmid_p).astype(jnp.bfloat16)
    out2 = fused_matmul(patches, w2, _pad_last(b2, Cmid_p),
                        apply_relu=True, out_dtype=jnp.bfloat16)[:, :Cmid]

    # ---- conv3 (1x1) + bn3 + downsample + residual add + relu : ONE call ----
    s3, b3 = _fold_bn(params["g3"], params["b3"], params["m3"], params["v3"], eps)
    w3 = _pad_last(params["w3"][:, :, 0, 0].T * s3[None, :], Cexp_p).astype(jnp.bfloat16)
    if "wds" in params:
        sds, bds = _fold_bn(params["gds"], params["bds"], params["mds"],
                            params["vds"], eps)
        wds = _pad_last(params["wds"][:, :, 0, 0].T * sds[None, :],
                        Cexp_p).astype(jnp.bfloat16)
        x_sub = x[:, ::stride, ::stride, :].reshape(M2, Cin).astype(jnp.bfloat16)
        out = fused_matmul(out2, w3, _pad_last(b3 + bds, Cexp_p),
                           residual=x_sub, residual_w=wds,
                           apply_relu=True, out_dtype=jnp.float32)
    else:
        # identity branch: only valid when stride == 1 and Cin == Cexp
        res = _pad_last(x.reshape(M2, Cin), Cexp_p)               # f32 exact add
        out = fused_matmul(out2, w3, _pad_last(b3, Cexp_p),
                           residual=res, apply_relu=True, out_dtype=jnp.float32)

    out = out[:, :Cexp].reshape(N, Ho, Wo, Cexp)
    return jnp.transpose(out, (0, 3, 1, 2))                        # NCHW


# --------------------------- pure-JAX reference --------------------------------

def _ref_forward(x, params, stride):
    def conv(x, w, s, pad):
        return jax.lax.conv_general_dilated(
            x, w, (s, s), [(pad, pad), (pad, pad)],
            dimension_numbers=("NCHW", "OIHW", "NCHW"))

    def bn(x, g, b, m, v):
        inv = 1.0 / jnp.sqrt(v + 1e-5)
        return (x - m[None, :, None, None]) * (g * inv)[None, :, None, None] \
            + b[None, :, None, None]

    out = jax.nn.relu(bn(conv(x, params["w1"], 1, 0),
                         params["g1"], params["b1"], params["m1"], params["v1"]))
    out = jax.nn.relu(bn(conv(out, params["w2"], stride, 1),
                         params["g2"], params["b2"], params["m2"], params["v2"]))
    out = bn(conv(out, params["w3"], 1, 0),
             params["g3"], params["b3"], params["m3"], params["v3"])
    if "wds" in params:
        idn = bn(conv(x, params["wds"], stride, 0),
                 params["gds"], params["bds"], params["mds"], params["vds"])
    else:
        idn = x
    return jax.nn.relu(out + idn)


# ----------------------------------- main --------------------------------------

def _make_params(key, cin, cmid, cexp, with_ds):
    ks = iter(jax.random.split(key, 32))

    def bn_params(c):
        return (1.0 + 0.1 * jax.random.normal(next(ks), (c,), jnp.float32),
                0.1 * jax.random.normal(next(ks), (c,), jnp.float32),
                0.1 * jax.random.normal(next(ks), (c,), jnp.float32),
                0.5 + jax.nn.softplus(jax.random.normal(next(ks), (c,), jnp.float32)))

    p = {"w1": 0.1 * jax.random.normal(next(ks), (cmid, cin, 1, 1), jnp.float32)}
    p["g1"], p["b1"], p["m1"], p["v1"] = bn_params(cmid)
    p["w2"] = 0.1 * jax.random.normal(next(ks), (cmid, cmid, 3, 3), jnp.float32)
    p["g2"], p["b2"], p["m2"], p["v2"] = bn_params(cmid)
    p["w3"] = 0.1 * jax.random.normal(next(ks), (cexp, cmid, 1, 1), jnp.float32)
    p["g3"], p["b3"], p["m3"], p["v3"] = bn_params(cexp)
    if with_ds:
        p["wds"] = 0.1 * jax.random.normal(next(ks), (cexp, cin, 1, 1), jnp.float32)
        p["gds"], p["bds"], p["mds"], p["vds"] = bn_params(cexp)
    return p


if __name__ == "__main__":
    key = jax.random.PRNGKey(0)
    k1, k2, k3, k4 = jax.random.split(key, 4)
    fwd = jax.jit(bottleneck_forward, static_argnums=2)

    # --- config 1: downsample branch (stride=2, channel expansion) ------------
    in_c, out_c, stride, expansion = 4, 8, 2, 4
    N, H, W = 2, 16, 16
    params1 = _make_params(k1, in_c, out_c, out_c * expansion, with_ds=True)
    x1 = jax.random.normal(k2, (N, in_c, H, W), jnp.float32)

    out = jax.block_until_ready(fwd(x1, params1, stride))
    ref = _ref_forward(x1, params1, stride)
    assert out.shape == (N, out_c * expansion, H // stride, W // stride), out.shape
    assert jnp.allclose(out, ref, atol=2e-2, rtol=2e-2), \
        float(jnp.max(jnp.abs(out - ref)))

    # --- config 2: identity residual (stride=1, in == out*expansion) ----------
    in_c2, out_c2 = 32, 8
    N2, H2, W2 = 1, 8, 8
    params2 = _make_params(k3, in_c2, out_c2, out_c2 * expansion, with_ds=False)
    x2 = jax.random.normal(k4, (N2, in_c2, H2, W2), jnp.float32)

    out2 = jax.block_until_ready(fwd(x2, params2, 1))
    ref2 = _ref_forward(x2, params2, 1)
    assert out2.shape == (N2, out_c2 * expansion, H2, W2), out2.shape
    assert jnp.allclose(out2, ref2, atol=2e-2, rtol=2e-2), \
        float(jnp.max(jnp.abs(out2 - ref2)))

    print("KERNEL_OK")
</pallas_src>

<mosaic_0001>
module attributes {stable_mosaic.version = 11 : i64} {
  func.func @_fused_matmul_kernel(%arg0: i32, %arg1: memref<512x4xbf16, #tpu.memory_space<vmem>>, %arg2: memref<4x128xbf16, #tpu.memory_space<vmem>>, %arg3: memref<1x128xf32, #tpu.memory_space<vmem>>, %arg4: memref<512x128xbf16, #tpu.memory_space<vmem>>) attributes {dimension_semantics = [#tpu.dimension_semantics<parallel>], iteration_bounds = array<i64: 1>, scalar_prefetch = 0 : i64, scratch_operands = 0 : i64, tpu.core_type = #tpu.core_type<tc>, window_params = [{transform_indices = @transform_0, window_bounds = array<i64: 512, 4>}, {pipeline_mode = #tpu.pipeline_mode<synchronous>, transform_indices = @transform_1, window_bounds = array<i64: 4, 128>}, {pipeline_mode = #tpu.pipeline_mode<synchronous>, transform_indices = @transform_2, window_bounds = array<i64: 1, 128>}, {transform_indices = @transform_3, window_bounds = array<i64: 512, 128>}]} {
    %c0 = arith.constant 0 : index
    %c0_0 = arith.constant 0 : index
    %0 = vector.load %arg1[%c0, %c0_0] : memref<512x4xbf16, #tpu.memory_space<vmem>>, vector<512x4xbf16>
    %c0_1 = arith.constant 0 : index
    %c0_2 = arith.constant 0 : index
    %1 = vector.load %arg2[%c0_1, %c0_2] : memref<4x128xbf16, #tpu.memory_space<vmem>>, vector<4x128xbf16>
    %cst = arith.constant dense<0.000000e+00> : vector<512x128xf32>
    %2 = tpu.matmul %0, %1, %cst {dimension_numbers = #tpu.dot_dimension_numbers<[1], [0], [0], [1], [0, 0, 1, 1], [], []>} : vector<512x4xbf16>, vector<4x128xbf16>, vector<512x128xf32> -> vector<512x128xf32>
    %c0_3 = arith.constant 0 : index
    %c0_4 = arith.constant 0 : index
    %3 = vector.load %arg3[%c0_3, %c0_4] : memref<1x128xf32, #tpu.memory_space<vmem>>, vector<1x128xf32>
    %4 = vector.broadcast %3 : vector<1x128xf32> to vector<512x128xf32>
    %5 = arith.addf %2, %4 : vector<512x128xf32>
    %cst_5 = arith.constant 0.000000e+00 : f32
    %6 = vector.broadcast %cst_5 : f32 to vector<512x128xf32>
    %7 = arith.maximumf %5, %6 : vector<512x128xf32>
    %8 = arith.truncf %7 : vector<512x128xf32> to vector<512x128xbf16>
    %c0_6 = arith.constant 0 : index
    %c0_7 = arith.constant 0 : index
    %9 = vector.load %arg4[%c0_6, %c0_7] : memref<512x128xbf16, #tpu.memory_space<vmem>>, vector<512x128xbf16>
    tpu.vector_store %arg4[%c0_6, %c0_7], %8 {strides = array<i32>} : memref<512x128xbf16, #tpu.memory_space<vmem>>, vector<512x128xbf16>,
    return
  }
  func.func @transform_0(%arg0: i32) -> (i32, i32) {
    %c0_i32 = arith.constant 0 : i32
    %c0_i32_0 = arith.constant 0 : i32
    return %arg0, %c0_i32 : i32, i32
  }
  func.func @transform_1(%arg0: i32) -> (i32, i32) {
    %c0_i32 = arith.constant 0 : i32
    %c0_i32_0 = arith.constant 0 : i32
    %c0_i32_1 = arith.constant 0 : i32
    return %c0_i32, %c0_i32_0 : i32, i32
  }
  func.func @transform_2(%arg0: i32) -> (i32, i32) {
    %c0_i32 = arith.constant 0 : i32
    %c0_i32_0 = arith.constant 0 : i32
    %c0_i32_1 = arith.constant 0 : i32
    return %c0_i32, %c0_i32_0 : i32, i32
  }
  func.func @transform_3(%arg0: i32) -> (i32, i32) {
    %c0_i32 = arith.constant 0 : i32
    %c0_i32_0 = arith.constant 0 : i32
    return %arg0, %c0_i32 : i32, i32
  }
}

module attributes {stable_mosaic.version = 11 : i64} {
  func.func @_fused_matmul_kernel(%arg0: i32, %arg1: memref<128x72xbf16, #tpu.memory_space<vmem>>, %arg2: memref<72x128xbf16, #tpu.memory_space<vmem>>, %arg3: memref<1x128xf32, #tpu.memory_space<vmem>>, %arg4: memref<128x128xbf16, #tpu.memory_space<vmem>>) attributes {dimension_semantics = [#tpu.dimension_semantics<parallel>], iteration_bounds = array<i64: 1>, scalar_prefetch = 0 : i64, scratch_operands = 0 : i64, tpu.core_type = #tpu.core_type<tc>, window_params = [{transform_indices = @transform_0, window_bounds = array<i64: 128, 72>}, {pipeline_mode = #tpu.pipeline_mode<synchronous>, transform_indices = @transform_1, window_bounds = array<i64: 72, 128>}, {pipeline_mode = #tpu.pipeline_mode<synchronous>, transform_indices = @transform_2, window_bounds = array<i64: 1, 128>}, {transform_indices = @transform_3, window_bounds = array<i64: 128, 128>}]} {
    %c0 = arith.constant 0 : index
    %c0_0 = arith.constant 0 : index
    %0 = vector.load %arg1[%c0, %c0_0] : memref<128x72xbf16, #tpu.memory_space<vmem>>, vector<128x72xbf16>
    %c0_1 = arith.constant 0 : index
    %c0_2 = arith.constant 0 : index
    %1 = vector.load %arg2[%c0_1, %c0_2] : memref<72x128xbf16, #tpu.memory_space<vmem>>, vector<72x128xbf16>
    %cst = arith.constant dense<0.000000e+00> : vector<128x128xf32>
    %2 = tpu.matmul %0, %1, %cst {dimension_numbers = #tpu.dot_dimension_numbers<[1], [0], [0], [1], [0, 0, 1, 1], [], []>} : vector<128x72xbf16>, vector<72x128xbf16>, vector<128x128xf32> -> vector<128x128xf32>
    %c0_3 = arith.constant 0 : index
    %c0_4 = arith.constant 0 : index
    %3 = vector.load %arg3[%c0_3, %c0_4] : memref<1x128xf32, #tpu.memory_space<vmem>>, vector<1x128xf32>
    %4 = vector.broadcast %3 : vector<1x128xf32> to vector<128x128xf32>
    %5 = arith.addf %2, %4 : vector<128x128xf32>
    %cst_5 = arith.constant 0.000000e+00 : f32
    %6 = vector.broadcast %cst_5 : f32 to vector<128x128xf32>
    %7 = arith.maximumf %5, %6 : vector<128x128xf32>
    %8 = arith.truncf %7 : vector<128x128xf32> to vector<128x128xbf16>
    %c0_6 = arith.constant 0 : index
    %c0_7 = arith.constant 0 : index
    %9 = vector.load %arg4[%c0_6, %c0_7] : memref<128x128xbf16, #tpu.memory_space<vmem>>, vector<128x128xbf16>
    tpu.vector_store %arg4[%c0_6, %c0_7], %8 {strides = array<i32>} : memref<128x128xbf16, #tpu.memory_space<vmem>>, vector<128x128xbf16>,
    return
  }
  func.func @transform_0(%arg0: i32) -> (i32, i32) {
    %c0_i32 = arith.constant 0 : i32
    %c0_i32_0 = arith.constant 0 : i32
    return %arg0, %c0_i32 : i32, i32
  }
  func.func @transform_1(%arg0: i32) -> (i32, i32) {
    %c0_i32 = arith.constant 0 : i32
    %c0_i32_0 = arith.constant 0 : i32
    %c0_i32_1 = arith.constant 0 : i32
    return %c0_i32, %c0_i32_0 : i32, i32
  }
  func.func @transform_2(%arg0: i32) -> (i32, i32) {
    %c0_i32 = arith.constant 0 : i32
    %c0_i32_0 = arith.constant 0 : i32
    %c0_i32_1 = arith.constant 0 : i32
    return %c0_i32, %c0_i32_0 : i32, i32
  }
  func.func @transform_3(%arg0: i32) -> (i32, i32) {
    %c0_i32 = arith.constant 0 : i32
    %c0_i32_0 = arith.constant 0 : i32
    return %arg0, %c0_i32 : i32, i32
  }
}

module attributes {stable_mosaic.version = 11 : i64} {
  func.func @_fused_matmul_kernel(%arg0: i32, %arg1: memref<128x8xbf16, #tpu.memory_space<vmem>>, %arg2: memref<8x128xbf16, #tpu.memory_space<vmem>>, %arg3: memref<1x128xf32, #tpu.memory_space<vmem>>, %arg4: memref<128x4xbf16, #tpu.memory_space<vmem>>, %arg5: memref<4x128xbf16, #tpu.memory_space<vmem>>, %arg6: memref<128x128xf32, #tpu.memory_space<vmem>>) attributes {dimension_semantics = [#tpu.dimension_semantics<parallel>], iteration_bounds = array<i64: 1>, scalar_prefetch = 0 : i64, scratch_operands = 0 : i64, tpu.core_type = #tpu.core_type<tc>, window_params = [{transform_indices = @transform_0, window_bounds = array<i64: 128, 8>}, {pipeline_mode = #tpu.pipeline_mode<synchronous>, transform_indices = @transform_1, window_bounds = array<i64: 8, 128>}, {pipeline_mode = #tpu.pipeline_mode<synchronous>, transform_indices = @transform_2, window_bounds = array<i64: 1, 128>}, {transform_indices = @transform_3, window_bounds = array<i64: 128, 4>}, {pipeline_mode = #tpu.pipeline_mode<synchronous>, transform_indices = @transform_4, window_bounds = array<i64: 4, 128>}, {transform_indices = @transform_5, window_bounds = array<i64: 128, 128>}]} {
    %c0 = arith.constant 0 : index
    %c0_0 = arith.constant 0 : index
    %0 = vector.load %arg1[%c0, %c0_0] : memref<128x8xbf16, #tpu.memory_space<vmem>>, vector<128x8xbf16>
    %c0_1 = arith.constant 0 : index
    %c0_2 = arith.constant 0 : index
    %1 = vector.load %arg2[%c0_1, %c0_2] : memref<8x128xbf16, #tpu.memory_space<vmem>>, vector<8x128xbf16>
    %cst = arith.constant dense<0.000000e+00> : vector<128x128xf32>
    %2 = tpu.matmul %0, %1, %cst {dimension_numbers = #tpu.dot_dimension_numbers<[1], [0], [0], [1], [0, 0, 1, 1], [], []>} : vector<128x8xbf16>, vector<8x128xbf16>, vector<128x128xf32> -> vector<128x128xf32>
    %c0_3 = arith.constant 0 : index
    %c0_4 = arith.constant 0 : index
    %3 = vector.load %arg3[%c0_3, %c0_4] : memref<1x128xf32, #tpu.memory_space<vmem>>, vector<1x128xf32>
    %4 = vector.broadcast %3 : vector<1x128xf32> to vector<128x128xf32>
    %5 = arith.addf %2, %4 : vector<128x128xf32>
    %c0_5 = arith.constant 0 : index
    %c0_6 = arith.constant 0 : index
    %6 = vector.load %arg4[%c0_5, %c0_6] : memref<128x4xbf16, #tpu.memory_space<vmem>>, vector<128x4xbf16>
    %c0_7 = arith.constant 0 : index
    %c0_8 = arith.constant 0 : index
    %7 = vector.load %arg5[%c0_7, %c0_8] : memref<4x128xbf16, #tpu.memory_space<vmem>>, vector<4x128xbf16>
    %cst_9 = arith.constant dense<0.000000e+00> : vector<128x128xf32>
    %8 = tpu.matmul %6, %7, %cst_9 {dimension_numbers = #tpu.dot_dimension_numbers<[1], [0], [0], [1], [0, 0, 1, 1], [], []>} : vector<128x4xbf16>, vector<4x128xbf16>, vector<128x128xf32> -> vector<128x128xf32>
    %9 = arith.addf %5, %8 : vector<128x128xf32>
    %cst_10 = arith.constant 0.000000e+00 : f32
    %10 = vector.broadcast %cst_10 : f32 to vector<128x128xf32>
    %11 = arith.maximumf %9, %10 : vector<128x128xf32>
    %c0_11 = arith.constant 0 : index
    %c0_12 = arith.constant 0 : index
    %12 = vector.load %arg6[%c0_11, %c0_12] : memref<128x128xf32, #tpu.memory_space<vmem>>, vector<128x128xf32>
    tpu.vector_store %arg6[%c0_11, %c0_12], %11 {strides = array<i32>} : memref<128x128xf32, #tpu.memory_space<vmem>>, vector<128x128xf32>,
    return
  }
  func.func @transform_0(%arg0: i32) -> (i32, i32) {
    %c0_i32 = arith.constant 0 : i32
    %c0_i32_0 = arith.constant 0 : i32
    return %arg0, %c0_i32 : i32, i32
  }
  func.func @transform_1(%arg0: i32) -> (i32, i32) {
    %c0_i32 = arith.constant 0 : i32
    %c0_i32_0 = arith.constant 0 : i32
    %c0_i32_1 = arith.constant 0 : i32
    return %c0_i32, %c0_i32_0 : i32, i32
  }
  func.func @transform_2(%arg0: i32) -> (i32, i32) {
    %c0_i32 = arith.constant 0 : i32
    %c0_i32_0 = arith.constant 0 : i32
    %c0_i32_1 = arith.constant 0 : i32
    return %c0_i32, %c0_i32_0 : i32, i32
  }
  func.func @transform_3(%arg0: i32) -> (i32, i32) {
    %c0_i32 = arith.constant 0 : i32
    %c0_i32_0 = arith.constant 0 : i32
    return %arg0, %c0_i32 : i32, i32
  }
  func.func @transform_4(%arg0: i32) -> (i32, i32) {
    %c0_i32 = arith.constant 0 : i32
    %c0_i32_0 = arith.constant 0 : i32
    %c0_i32_1 = arith.constant 0 : i32
    return %c0_i32, %c0_i32_0 : i32, i32
  }
  func.func @transform_5(%arg0: i32) -> (i32, i32) {
    %c0_i32 = arith.constant 0 : i32
    %c0_i32_0 = arith.constant 0 : i32
    return %arg0, %c0_i32 : i32, i32
  }
}

</mosaic_0001>

<llo_original>
// kernel: bottleneck_forward.4
$region0: #{bottleneck_forward.4}
  #allocation0 [shape = 'u32[]', space=smem, size = 0x4, offset = 0x4, fixed_abs, tag = 'smem constant byte address 0x4 - core index']
  #allocation1 [shape = 'u32[144,128]{1,0:T(1,128)}', space=vmem, size = 0x12000, scoped, tag = 'internal scratch']
  %s0 = inlined_call_operand.vmem [shape: bf16[128,72], index: 0, kind: input, shape index: {}]
  %s1 = inlined_call_operand.vmem [shape: bf16[72,128], index: 1, kind: input, shape index: {}]
  %s2 = inlined_call_operand.vmem [shape: f32[1,128], index: 2, kind: input, shape index: {}]
  %s3 = inlined_call_operand.vmem [shape: bf16[128,128], index: 3, kind: output, shape index: {}]
  %s4 = sld [smem:[#allocation0]]
  $region22: #{bottleneck_forward.4} parent=0
    _
  %s6 = ssub.s32 1, %s4
  %s7 = scalar_select 0, %s6, %s4
  // Predicated region
  $region2: #{bottleneck_forward.4} parent=0 // pred_check
    _
  $region3: #{bottleneck_forward.4} parent=0 // pred_check_branch
    %9 = sbr.rel (0) target = $region5
  $region4: #{bottleneck_forward.4} parent=0 // pred_region
    _
  $region5: #{bottleneck_forward.4} parent=0 // pred_fallthru
    _
  // Predicated region
  $region6: #{bottleneck_forward.4} parent=0 // pred_check
    _
  $region7: #{bottleneck_forward.4} parent=0 // pred_check_branch
    %11 = sbr.rel (0) target = $region9
  $region8: #{bottleneck_forward.4} parent=0 // pred_region
    _
  $region9: #{bottleneck_forward.4} parent=0 // pred_fallthru
    _
  // Predicated region
  $region10: #{bottleneck_forward.4} parent=0 // pred_check
    _
  $region11: #{bottleneck_forward.4} parent=0 // pred_check_branch
    %13 = sbr.rel (0) target = $region13
  $region12: #{bottleneck_forward.4} parent=0 // pred_region
    _
  $region13: #{bottleneck_forward.4} parent=0 // pred_fallthru
    _
  %v15 = vld [vmem:[%s0] sm:$0xf]
  %v16 = vld [vmem:[%s0 + $0x4] sm:$0xf]
  %v17 = vld [vmem:[%s0 + $0x8] sm:$0xf]
  %v18 = vld [vmem:[%s0 + $0xc] sm:$0xf]
  %v19 = vld [vmem:[%s0 + $0x10] sm:$0xf]
  %v20 = vld [vmem:[%s0 + $0x14] sm:$0xf]
  %v21 = vld [vmem:[%s0 + $0x18] sm:$0xf]
  %v22 = vld [vmem:[%s0 + $0x1c] sm:$0xf]
  %v23 = vld [vmem:[%s0 + $0x20] sm:$0xf]
  %v24 = vld [vmem:[%s0 + $0x24] sm:$0xf]
  %v25 = vld [vmem:[%s0 + $0x28] sm:$0xf]
  %v26 = vld [vmem:[%s0 + $0x2c] sm:$0xf]
  %v27 = vld [vmem:[%s0 + $0x30] sm:$0xf]
  %v28 = vld [vmem:[%s0 + $0x34] sm:$0xf]
  %v29 = vld [vmem:[%s0 + $0x38] sm:$0xf]
  %v30 = vld [vmem:[%s0 + $0x3c] sm:$0xf]
  %v31 = vld [vmem:[%s1] sm:$0xf]
  %v32 = vld [vmem:[%s1 + $0x4] sm:$0xf]
  %v33 = vld [vmem:[%s1 + $0x8] sm:$0xf]
  %v34 = vld [vmem:[%s1 + $0xc] sm:$0xf]
  %v35 = vld [vmem:[%s1 + $0x10] sm:$0xf]
  %v36 = vld [vmem:[%s1 + $0x14] sm:$0xf]
  %v37 = vld [vmem:[%s1 + $0x18] sm:$0xf]
  %v38 = vld [vmem:[%s1 + $0x1c] sm:$0xf]
  %v39 = vld [vmem:[%s1 + $0x20] sm:$0xf]
  %v40 = vld [vmem:[%s2] sm:$0x1]
  %v42 = vlaneseq
  %v43 = vshrl.u32 %v42, 7
  %v44 = vsub.s32 0, %v43
  %v45 = vrot.slane %v40, %v44
  %v63 = vunpack.c.l.b16 %v15
  %v64 = vunpack.c.l.b16 %v16
  %v65 = vunpack.c.l.b16 %v17
  %v66 = vunpack.c.l.b16 %v18
  %v67 = vunpack.c.l.b16 %v19
  %v68 = vunpack.c.l.b16 %v20
  %v69 = vunpack.c.l.b16 %v21
  %v70 = vunpack.c.l.b16 %v22
  %v71 = vunpack.c.l.b16 %v23
  %v72 = vunpack.c.l.b16 %v24
  %v73 = vunpack.c.l.b16 %v25
  %v74 = vunpack.c.l.b16 %v26
  %v75 = vunpack.c.l.b16 %v27
  %v76 = vunpack.c.l.b16 %v28
  %v77 = vunpack.c.l.b16 %v29
  %v78 = vunpack.c.l.b16 %v30
  %v79 = vpack.c.b16 %v64, %v63
  %v80 = vpack.c.b16 %v66, %v65
  %v81 = vpack.c.b16 %v68, %v67
  %v82 = vpack.c.b16 %v70, %v69
  %v83 = vpack.c.b16 %v72, %v71
  %v84 = vpack.c.b16 %v74, %v73
  %v85 = vpack.c.b16 %v76, %v75
  %v86 = vpack.c.b16 %v78, %v77
  %v96 = vunpack.c.l.b16 %v31
  %v97 = vunpack.c.l.b16 %v32
  %v98 = vunpack.c.l.b16 %v33
  %v99 = vunpack.c.l.b16 %v34
  %v100 = vunpack.c.l.b16 %v35
  %v101 = vunpack.c.l.b16 %v36
  %v102 = vunpack.c.l.b16 %v37
  %v103 = vunpack.c.l.b16 %v38
  %v104 = vunpack.c.l.b16 %v39
  %v105 = vpack.c.b16 %v97, %v96
  %v106 = vpack.c.b16 %v99, %v98
  %v107 = vpack.c.b16 %v101, %v100
  %v108 = vpack.c.b16 %v103, %v102
  %v109 = vpack.c.b16 %v104, %v104
  %vm114 = vcmask 588800
  %v116 = vsel %vm114, %v79, 0
  %v119 = vsel %vm114, %v80, 0
  %v122 = vsel %vm114, %v81, 0
  %v125 = vsel %vm114, %v82, 0
  %v128 = vsel %vm114, %v83, 0
  %v131 = vsel %vm114, %v84, 0
  %v134 = vsel %vm114, %v85, 0
  %v137 = vsel %vm114, %v86, 0
  %vm139 = vcmask 1043456
  %v141 = vsel %vm139, %v109, 0
  %143 = vmatprep.subr.bf16.mxu0 0
  %144 = vmatpush1.bf16.msra.mxu0 %v105
  %145 = vmatprep.subr.bf16.mxu0 0
  %146 = vmatpush1.bf16.msra.mxu0 %v106
  %147 = vmatprep.subr.bf16.mxu0 0
  %148 = vmatpush1.bf16.msra.mxu0 %v107
  %149 = vmatprep.subr.bf16.mxu0 0
  %150 = vmatpush1.bf16.msra.mxu0 %v108
  %151 = vmatprep.subr.bf16.mxu0 0
  %152 = vmatpush1.bf16.msra.mxu0 %v141
  %153 = vmatprep.subr.bf16.mxu0 0
  %154 = vmatpush1.bf16.msra.mxu0 0
  %155 = vmatprep.subr.bf16.mxu0 0
  %156 = vmatpush1.bf16.msra.mxu0 0
  %157 = vmatprep.subr.bf16.mxu0 0
  %158 = vmatpush1.bf16.msra.mxu0 0
  %159 = vmatprep.subr.bf16.mxu0 0
  %160 = vmatpush1.bf16.msra.mxu0 0
  %161 = vmatprep.subr.bf16.mxu0 0
  %162 = vmatpush1.bf16.msra.mxu0 0
  %163 = vmatprep.subr.bf16.mxu0 0
  %164 = vmatpush1.bf16.msra.mxu0 0
  %165 = vmatprep.subr.bf16.mxu0 0
  %166 = vmatpush1.bf16.msra.mxu0 0
  %167 = vmatprep.subr.bf16.mxu0 0
  %168 = vmatpush1.bf16.msra.mxu0 0
  %169 = vmatprep.subr.bf16.mxu0 0
  %170 = vmatpush1.bf16.msra.mxu0 0
  %171 = vmatprep.subr.bf16.mxu0 0
  %172 = vmatpush1.bf16.msra.mxu0 0
  %173 = vmatprep.subr.bf16.mxu0 0
  %174 = vmatpush1.bf16.msra.mxu0 0
  %175 = vmatprep.mubr.bf16.mxu0 0
  %176 = vmatmul.mubr.bf16.gmra.mrb[0].mxu0 %v116
  %v177 = vpop.f32.mrb[0].mxu0
  %v178 = vadd.f32 %v45, %v177
  %v179 = vpop.f32.mrb[0].mxu0
  %v180 = vpop.f32.mrb[0].mxu0
  %v181 = vadd.f32 %v45, %v180
  %v182 = vpop.f32.mrb[0].mxu0
  %183 = vmatprep.mubr.bf16.mxu0 0
  %184 = vmatmul.mubr.bf16.gmra.mrb[0].mxu0 %v119
  %v185 = vpop.f32.mrb[0].mxu0
  %v186 = vadd.f32 %v45, %v185
  %v187 = vpop.f32.mrb[0].mxu0
  %v188 = vpop.f32.mrb[0].mxu0
  %v189 = vadd.f32 %v45, %v188
  %v190 = vpop.f32.mrb[0].mxu0
  %191 = vmatprep.mubr.bf16.mxu0 0
  %192 = vmatmul.mubr.bf16.gmra.mrb[0].mxu0 %v122
  %v193 = vpop.f32.mrb[0].mxu0
  %v194 = vadd.f32 %v45, %v193
  %v195 = vpop.f32.mrb[0].mxu0
  %v196 = vpop.f32.mrb[0].mxu0
  %v197 = vadd.f32 %v45, %v196
  %v198 = vpop.f32.mrb[0].mxu0
  %199 = vmatprep.mubr.bf16.mxu0 0
  %200 = vmatmul.mubr.bf16.gmra.mrb[0].mxu0 %v125
  %v201 = vpop.f32.mrb[0].mxu0
  %v202 = vadd.f32 %v45, %v201
  %v203 = vpop.f32.mrb[0].mxu0
  %v204 = vpop.f32.mrb[0].mxu0
  %v205 = vadd.f32 %v45, %v204
  %v206 = vpop.f32.mrb[0].mxu0
  %207 = vmatprep.mubr.bf16.mxu0 0
  %208 = vmatmul.mubr.bf16.gmra.mrb[0].mxu0 %v128
  %v209 = vpop.f32.mrb[0].mxu0
  %v210 = vadd.f32 %v45, %v209
  %v211 = vpop.f32.mrb[0].mxu0
  %v212 = vpop.f32.mrb[0].mxu0
  %v213 = vadd.f32 %v45, %v212
  %v214 = vpop.f32.mrb[0].mxu0
  %215 = vmatprep.mubr.bf16.mxu0 0
  %216 = vmatmul.mubr.bf16.gmra.mrb[0].mxu0 %v131
  %v217 = vpop.f32.mrb[0].mxu0
  %v218 = vadd.f32 %v45, %v217
  %v219 = vpop.f32.mrb[0].mxu0
  %v220 = vpop.f32.mrb[0].mxu0
  %v221 = vadd.f32 %v45, %v220
  %v222 = vpop.f32.mrb[0].mxu0
  %223 = vmatprep.mubr.bf16.mxu0 0
  %224 = vmatmul.mubr.bf16.gmra.mrb[0].mxu0 %v134
  %v225 = vpop.f32.mrb[0].mxu0
  %v226 = vadd.f32 %v45, %v225
  %v227 = vpop.f32.mrb[0].mxu0
  %v228 = vpop.f32.mrb[0].mxu0
  %v229 = vadd.f32 %v45, %v228
  %v230 = vpop.f32.mrb[0].mxu0
  %231 = vmatprep.mubr.bf16.mxu0 0
  %232 = vmatmul.mubr.bf16.gmra.mrb[0].mxu0 %v137
  %v233 = vpop.f32.mrb[0].mxu0
  %v234 = vadd.f32 %v45, %v233
  %v235 = vpop.f32.mrb[0].mxu0
  %v236 = vpop.f32.mrb[0].mxu0
  %v237 = vadd.f32 %v45, %v236
  %v238 = vpop.f32.mrb[0].mxu0
  %239 = vdwg.mxu0
  %v240 = vmax.f32 %v178, 0.0
  %v241 = vmax.f32 %v181, 0.0
  %v242 = vmax.f32 %v186, 0.0
  %v243 = vmax.f32 %v189, 0.0
  %v244 = vmax.f32 %v194, 0.0
  %v245 = vmax.f32 %v197, 0.0
  %v246 = vmax.f32 %v202, 0.0
  %v247 = vmax.f32 %v205, 0.0
  %v248 = vmax.f32 %v210, 0.0
  %v249 = vmax.f32 %v213, 0.0
  %v250 = vmax.f32 %v218, 0.0
  %v251 = vmax.f32 %v221, 0.0
  %v252 = vmax.f32 %v226, 0.0
  %v253 = vmax.f32 %v229, 0.0
  %v254 = vmax.f32 %v234, 0.0
  %v255 = vmax.f32 %v237, 0.0
  %v256 = vpack.c.bf16 %v241, %v240
  %v257 = vpack.c.bf16 %v243, %v242
  %v258 = vpack.c.bf16 %v245, %v244
  %v259 = vpack.c.bf16 %v247, %v246
  %v260 = vpack.c.bf16 %v249, %v248
  %v261 = vpack.c.bf16 %v251, %v250
  %v262 = vpack.c.bf16 %v253, %v252
  %v263 = vpack.c.bf16 %v255, %v254
  %v272 = vunpack.c.l.b16 %v256
  %v273 = vunpack.c.h.b16 %v256
  %v274 = vunpack.c.l.b16 %v257
  %v275 = vunpack.c.h.b16 %v257
  %v276 = vunpack.c.l.b16 %v258
  %v277 = vunpack.c.h.b16 %v258
  %v278 = vunpack.c.l.b16 %v259
  %v279 = vunpack.c.h.b16 %v259
  %v280 = vunpack.c.l.b16 %v260
  %v281 = vunpack.c.h.b16 %v260
  %v282 = vunpack.c.l.b16 %v261
  %v283 = vunpack.c.h.b16 %v261
  %v284 = vunpack.c.l.b16 %v262
  %v285 = vunpack.c.h.b16 %v262
  %v286 = vunpack.c.l.b16 %v263
  %v287 = vunpack.c.h.b16 %v263
  %v288 = vpack.c.b16 %v272, %v272
  %v289 = vpack.c.b16 %v273, %v273
  %v290 = vpack.c.b16 %v274, %v274
  %v291 = vpack.c.b16 %v275, %v275
  %v292 = vpack.c.b16 %v276, %v276
  %v293 = vpack.c.b16 %v277, %v277
  %v294 = vpack.c.b16 %v278, %v278
  %v295 = vpack.c.b16 %v279, %v279
  %v296 = vpack.c.b16 %v280, %v280
  %v297 = vpack.c.b16 %v281, %v281
  %v298 = vpack.c.b16 %v282, %v282
  %v299 = vpack.c.b16 %v283, %v283
  %v300 = vpack.c.b16 %v284, %v284
  %v301 = vpack.c.b16 %v285, %v285
  %v302 = vpack.c.b16 %v286, %v286
  %v303 = vpack.c.b16 %v287, %v287
  %320 = vst [vmem:[%s3] sm:$0xf] %v288
  %321 = vst [vmem:[%s3 + $0x4] sm:$0xf] %v289
  %322 = vst [vmem:[%s3 + $0x8] sm:$0xf] %v290
  %323 = vst [vmem:[%s3 + $0xc] sm:$0xf] %v291
  %324 = vst [vmem:[%s3 + $0x10] sm:$0xf] %v292
  %325 = vst [vmem:[%s3 + $0x14] sm:$0xf] %v293
  %326 = vst [vmem:[%s3 + $0x18] sm:$0xf] %v294
  %327 = vst [vmem:[%s3 + $0x1c] sm:$0xf] %v295
  %328 = vst [vmem:[%s3 + $0x20] sm:$0xf] %v296
  %329 = vst [vmem:[%s3 + $0x24] sm:$0xf] %v297
  %330 = vst [vmem:[%s3 + $0x28] sm:$0xf] %v298
  %331 = vst [vmem:[%s3 + $0x2c] sm:$0xf] %v299
  %332 = vst [vmem:[%s3 + $0x30] sm:$0xf] %v300
  %333 = vst [vmem:[%s3 + $0x34] sm:$0xf] %v301
  %334 = vst [vmem:[%s3 + $0x38] sm:$0xf] %v302
  %335 = vst [vmem:[%s3 + $0x3c] sm:$0xf] %v303
  // Predicated region
  $region14: #{bottleneck_forward.4} parent=0 // pred_check
    _
  $region15: #{bottleneck_forward.4} parent=0 // pred_check_branch
    %337 = sbr.rel (0) target = $region17
  $region16: #{bottleneck_forward.4} parent=0 // pred_region
    _
  $region17: #{bottleneck_forward.4} parent=0 // pred_fallthru
    _
  // Predicated region
  $region18: #{bottleneck_forward.4} parent=0 // pred_check
    _
  $region19: #{bottleneck_forward.4} parent=0 // pred_check_branch
    %339 = sbr.rel (0) target = $region21
  $region20: #{bottleneck_forward.4} parent=0 // pred_region
    _
  $region21: #{bottleneck_forward.4} parent=0 // pred_fallthru
    _

// kernel: bottleneck_forward.3
$region0: #{bottleneck_forward.3}
  #allocation0 [shape = 'u32[]', space=smem, size = 0x4, offset = 0x4, fixed_abs, tag = 'smem constant byte address 0x4 - core index']
  #allocation1 [shape = 'u32[144,128]{1,0:T(1,128)}', space=vmem, size = 0x12000, scoped, tag = 'internal scratch']
  %s0 = inlined_call_operand.vmem [shape: bf16[512,4], index: 0, kind: input, shape index: {}]
  %s1 = inlined_call_operand.vmem [shape: bf16[4,128], index: 1, kind: input, shape index: {}]
  %s2 = inlined_call_operand.vmem [shape: f32[1,128], index: 2, kind: input, shape index: {}]
  %s3 = inlined_call_operand.vmem [shape: bf16[512,128], index: 3, kind: output, shape index: {}]
  %s4 = sld [smem:[#allocation0]]
  $region22: #{bottleneck_forward.3} parent=0
    _
  %s6 = ssub.s32 1, %s4
  %s7 = scalar_select 0, %s6, %s4
  // Predicated region
  $region2: #{bottleneck_forward.3} parent=0 // pred_check
    _
  $region3: #{bottleneck_forward.3} parent=0 // pred_check_branch
    %9 = sbr.rel (0) target = $region5
  $region4: #{bottleneck_forward.3} parent=0 // pred_region
    _
  $region5: #{bottleneck_forward.3} parent=0 // pred_fallthru
    _
  // Predicated region
  $region6: #{bottleneck_forward.3} parent=0 // pred_check
    _
  $region7: #{bottleneck_forward.3} parent=0 // pred_check_branch
    %11 = sbr.rel (0) target = $region9
  $region8: #{bottleneck_forward.3} parent=0 // pred_region
    _
  $region9: #{bottleneck_forward.3} parent=0 // pred_fallthru
    _
  // Predicated region
  $region10: #{bottleneck_forward.3} parent=0 // pred_check
    _
  $region11: #{bottleneck_forward.3} parent=0 // pred_check_branch
    %13 = sbr.rel (0) target = $region13
  $region12: #{bottleneck_forward.3} parent=0 // pred_region
    _
  $region13: #{bottleneck_forward.3} parent=0 // pred_fallthru
    _
  %v15 = vld [vmem:[%s0] sm:$0xf]
  %v16 = vld [vmem:[%s0 + $0x4] sm:$0xf]
  %v17 = vld [vmem:[%s0 + $0x8] sm:$0xf]
  %v18 = vld [vmem:[%s0 + $0xc] sm:$0xf]
  %v19 = vld [vmem:[%s0 + $0x10] sm:$0xf]
  %v20 = vld [vmem:[%s0 + $0x14] sm:$0xf]
  %v21 = vld [vmem:[%s0 + $0x18] sm:$0xf]
  %v22 = vld [vmem:[%s0 + $0x1c] sm:$0xf]
  %v23 = vld [vmem:[%s0 + $0x20] sm:$0xf]
  %v24 = vld [vmem:[%s0 + $0x24] sm:$0xf]
  %v25 = vld [vmem:[%s0 + $0x28] sm:$0xf]
  %v26 = vld [vmem:[%s0 + $0x2c] sm:$0xf]
  %v27 = vld [vmem:[%s0 + $0x30] sm:$0xf]
  %v28 = vld [vmem:[%s0 + $0x34] sm:$0xf]
  %v29 = vld [vmem:[%s0 + $0x38] sm:$0xf]
  %v30 = vld [vmem:[%s0 + $0x3c] sm:$0xf]
  %v31 = vld [vmem:[%s0 + $0x40] sm:$0xf]
  %v32 = vld [vmem:[%s0 + $0x44] sm:$0xf]
  %v33 = vld [vmem:[%s0 + $0x48] sm:$0xf]
  %v34 = vld [vmem:[%s0 + $0x4c] sm:$0xf]
  %v35 = vld [vmem:[%s0 + $0x50] sm:$0xf]
  %v36 = vld [vmem:[%s0 + $0x54] sm:$0xf]
  %v37 = vld [vmem:[%s0 + $0x58] sm:$0xf]
  %v38 = vld [vmem:[%s0 + $0x5c] sm:$0xf]
  %v39 = vld [vmem:[%s0 + $0x60] sm:$0xf]
  %v40 = vld [vmem:[%s0 + $0x64] sm:$0xf]
  %v41 = vld [vmem:[%s0 + $0x68] sm:$0xf]
  %v42 = vld [vmem:[%s0 + $0x6c] sm:$0xf]
  %v43 = vld [vmem:[%s0 + $0x70] sm:$0xf]
  %v44 = vld [vmem:[%s0 + $0x74] sm:$0xf]
  %v45 = vld [vmem:[%s0 + $0x78] sm:$0xf]
  %v46 = vld [vmem:[%s0 + $0x7c] sm:$0xf]
  %v47 = vld [vmem:[%s0 + $0x80] sm:$0xf]
  %v48 = vld [vmem:[%s0 + $0x84] sm:$0xf]
  %v49 = vld [vmem:[%s0 + $0x88] sm:$0xf]
  %v50 = vld [vmem:[%s0 + $0x8c] sm:$0xf]
  %v51 = vld [vmem:[%s0 + $0x90] sm:$0xf]
  %v52 = vld [vmem:[%s0 + $0x94] sm:$0xf]
  %v53 = vld [vmem:[%s0 + $0x98] sm:$0xf]
  %v54 = vld [vmem:[%s0 + $0x9c] sm:$0xf]
  %v55 = vld [vmem:[%s0 + $0xa0] sm:$0xf]
  %v56 = vld [vmem:[%s0 + $0xa4] sm:$0xf]
  %v57 = vld [vmem:[%s0 + $0xa8] sm:$0xf]
  %v58 = vld [vmem:[%s0 + $0xac] sm:$0xf]
  %v59 = vld [vmem:[%s0 + $0xb0] sm:$0xf]
  %v60 = vld [vmem:[%s0 + $0xb4] sm:$0xf]
  %v61 = vld [vmem:[%s0 + $0xb8] sm:$0xf]
  %v62 = vld [vmem:[%s0 + $0xbc] sm:$0xf]
  %v63 = vld [vmem:[%s0 + $0xc0] sm:$0xf]
  %v64 = vld [vmem:[%s0 + $0xc4] sm:$0xf]
  %v65 = vld [vmem:[%s0 + $0xc8] sm:$0xf]
  %v66 = vld [vmem:[%s0 + $0xcc] sm:$0xf]
  %v67 = vld [vmem:[%s0 + $0xd0] sm:$0xf]
  %v68 = vld [vmem:[%s0 + $0xd4] sm:$0xf]
  %v69 = vld [vmem:[%s0 + $0xd8] sm:$0xf]
  %v70 = vld [vmem:[%s0 + $0xdc] sm:$0xf]
  %v71 = vld [vmem:[%s0 + $0xe0] sm:$0xf]
  %v72 = vld [vmem:[%s0 + $0xe4] sm:$0xf]
  %v73 = vld [vmem:[%s0 + $0xe8] sm:$0xf]
  %v74 = vld [vmem:[%s0 + $0xec] sm:$0xf]
  %v75 = vld [vmem:[%s0 + $0xf0] sm:$0xf]
  %v76 = vld [vmem:[%s0 + $0xf4] sm:$0xf]
  %v77 = vld [vmem:[%s0 + $0xf8] sm:$0xf]
  %v78 = vld [vmem:[%s0 + $0xfc] sm:$0xf]
  %v79 = vld [vmem:[%s1] sm:$0x3]
  %v80 = vld [vmem:[%s2] sm:$0x1]
  %v82 = vlaneseq
  %v83 = vshrl.u32 %v82, 7
  %v84 = vsub.s32 0, %v83
  %v85 = vrot.slane %v80, %v84
  %v151 = vunpack.c.l.b16 %v15
  %v152 = vunpack.c.l.b16 %v16
  %v153 = vunpack.c.l.b16 %v17
  %v154 = vunpack.c.l.b16 %v18
  %v155 = vunpack.c.l.b16 %v19
  %v156 = vunpack.c.l.b16 %v20
  %v157 = vunpack.c.l.b16 %v21
  %v158 = vunpack.c.l.b16 %v22
  %v159 = vunpack.c.l.b16 %v23
  %v160 = vunpack.c.l.b16 %v24
  %v161 = vunpack.c.l.b16 %v25
  %v162 = vunpack.c.l.b16 %v26
  %v163 = vunpack.c.l.b16 %v27
  %v164 = vunpack.c.l.b16 %v28
  %v165 = vunpack.c.l.b16 %v29
  %v166 = vunpack.c.l.b16 %v30
  %v167 = vunpack.c.l.b16 %v31
  %v168 = vunpack.c.l.b16 %v32
  %v169 = vunpack.c.l.b16 %v33
  %v170 = vunpack.c.l.b16 %v34
  %v171 = vunpack.c.l.b16 %v35
  %v172 = vunpack.c.l.b16 %v36
  %v173 = vunpack.c.l.b16 %v37
  %v174 = vunpack.c.l.b16 %v38
  %v175 = vunpack.c.l.b16 %v39
  %v176 = vunpack.c.l.b16 %v40
  %v177 = vunpack.c.l.b16 %v41
  %v178 = vunpack.c.l.b16 %v42
  %v179 = vunpack.c.l.b16 %v43
  %v180 = vunpack.c.l.b16 %v44
  %v181 = vunpack.c.l.b16 %v45
  %v182 = vunpack.c.l.b16 %v46
  %v183 = vunpack.c.l.b16 %v47
  %v184 = vunpack.c.l.b16 %v48
  %v185 = vunpack.c.l.b16 %v49
  %v186 = vunpack.c.l.b16 %v50
  %v187 = vunpack.c.l.b16 %v51
  %v188 = vunpack.c.l.b16 %v52
  %v189 = vunpack.c.l.b16 %v53
  %v190 = vunpack.c.l.b16 %v54
  %v191 = vunpack.c.l.b16 %v55
  %v192 = vunpack.c.l.b16 %v56
  %v193 = vunpack.c.l.b16 %v57
  %v194 = vunpack.c.l.b16 %v58
  %v195 = vunpack.c.l.b16 %v59
  %v196 = vunpack.c.l.b16 %v60
  %v197 = vunpack.c.l.b16 %v61
  %v198 = vunpack.c.l.b16 %v62
  %v199 = vunpack.c.l.b16 %v63
  %v200 = vunpack.c.l.b16 %v64
  %v201 = vunpack.c.l.b16 %v65
  %v202 = vunpack.c.l.b16 %v66
  %v203 = vunpack.c.l.b16 %v67
  %v204 = vunpack.c.l.b16 %v68
  %v205 = vunpack.c.l.b16 %v69
  %v206 = vunpack.c.l.b16 %v70
  %v207 = vunpack.c.l.b16 %v71
  %v208 = vunpack.c.l.b16 %v72
  %v209 = vunpack.c.l.b16 %v73
  %v210 = vunpack.c.l.b16 %v74
  %v211 = vunpack.c.l.b16 %v75
  %v212 = vunpack.c.l.b16 %v76
  %v213 = vunpack.c.l.b16 %v77
  %v214 = vunpack.c.l.b16 %v78
  %v215 = vpack.c.b16 %v152, %v151
  %v216 = vpack.c.b16 %v154, %v153
  %v217 = vpack.c.b16 %v156, %v155
  %v218 = vpack.c.b16 %v158, %v157
  %v219 = vpack.c.b16 %v160, %v159
  %v220 = vpack.c.b16 %v162, %v161
  %v221 = vpack.c.b16 %v164, %v163
  %v222 = vpack.c.b16 %v166, %v165
  %v223 = vpack.c.b16 %v168, %v167
  %v224 = vpack.c.b16 %v170, %v169
  %v225 = vpack.c.b16 %v172, %v171
  %v226 = vpack.c.b16 %v174, %v173
  %v227 = vpack.c.b16 %v176, %v175
  %v228 = vpack.c.b16 %v178, %v177
  %v229 = vpack.c.b16 %v180, %v179
  %v230 = vpack.c.b16 %v182, %v181
  %v231 = vpack.c.b16 %v184, %v183
  %v232 = vpack.c.b16 %v186, %v185
  %v233 = vpack.c.b16 %v188, %v187
  %v234 = vpack.c.b16 %v190, %v189
  %v235 = vpack.c.b16 %v192, %v191
  %v236 = vpack.c.b16 %v194, %v193
  %v237 = vpack.c.b16 %v196, %v195
  %v238 = vpack.c.b16 %v198, %v197
  %v239 = vpack.c.b16 %v200, %v199
  %v240 = vpack.c.b16 %v202, %v201
  %v241 = vpack.c.b16 %v204, %v203
  %v242 = vpack.c.b16 %v206, %v205
  %v243 = vpack.c.b16 %v208, %v207
  %v244 = vpack.c.b16 %v210, %v209
  %v245 = vpack.c.b16 %v212, %v211
  %v246 = vpack.c.b16 %v214, %v213
  %vm247 = vcmask 31744
  %v249 = vsel %vm247, %v215, 0
  %v252 = vsel %vm247, %v216, 0
  %v255 = vsel %vm247, %v217, 0
  %v258 = vsel %vm247, %v218, 0
  %v261 = vsel %vm247, %v219, 0
  %v264 = vsel %vm247, %v220, 0
  %v267 = vsel %vm247, %v221, 0
  %v270 = vsel %vm247, %v222, 0
  %v273 = vsel %vm247, %v223, 0
  %v276 = vsel %vm247, %v224, 0
  %v279 = vsel %vm247, %v225, 0
  %v282 = vsel %vm247, %v226, 0
  %v285 = vsel %vm247, %v227, 0
  %v288 = vsel %vm247, %v228, 0
  %v291 = vsel %vm247, %v229, 0
  %v294 = vsel %vm247, %v230, 0
  %v297 = vsel %vm247, %v231, 0
  %v300 = vsel %vm247, %v232, 0
  %v303 = vsel %vm247, %v233, 0
  %v306 = vsel %vm247, %v234, 0
  %v309 = vsel %vm247, %v235, 0
  %v312 = vsel %vm247, %v236, 0
  %v315 = vsel %vm247, %v237, 0
  %v318 = vsel %vm247, %v238, 0
  %v321 = vsel %vm247, %v239, 0
  %v324 = vsel %vm247, %v240, 0
  %v327 = vsel %vm247, %v241, 0
  %v330 = vsel %vm247, %v242, 0
  %v333 = vsel %vm247, %v243, 0
  %v336 = vsel %vm247, %v244, 0
  %v339 = vsel %vm247, %v245, 0
  %v342 = vsel %vm247, %v246, 0
  %vm344 = vcmask 1041408
  %v346 = vsel %vm344, %v79, 0
  %348 = vmatprep.subr.bf16.mxu0 0
  %349 = vmatpush1.bf16.msra.mxu0 %v346
  %350 = vmatprep.subr.bf16.mxu0 0
  %351 = vmatpush1.bf16.msra.mxu0 0
  %352 = vmatprep.subr.bf16.mxu0 0
  %353 = vmatpush1.bf16.msra.mxu0 0
  %354 = vmatprep.subr.bf16.mxu0 0
  %355 = vmatpush1.bf16.msra.mxu0 0
  %356 = vmatprep.subr.bf16.mxu0 0
  %357 = vmatpush1.bf16.msra.mxu0 0
  %358 = vmatprep.subr.bf16.mxu0 0
  %359 = vmatpush1.bf16.msra.mxu0 0
  %360 = vmatprep.subr.bf16.mxu0 0
  %361 = vmatpush1.bf16.msra.mxu0 0
  %362 = vmatprep.subr.bf16.mxu0 0
  %363 = vmatpush1.bf16.msra.mxu0 0
  %364 = vmatprep.subr.bf16.mxu0 0
  %365 = vmatpush1.bf16.msra.mxu0 0
  %366 = vmatprep.subr.bf16.mxu0 0
  %367 = vmatpush1.bf16.msra.mxu0 0
  %368 = vmatprep.subr.bf16.mxu0 0
  %369 = vmatpush1.bf16.msra.mxu0 0
  %370 = vmatprep.subr.bf16.mxu0 0
  %371 = vmatpush1.bf16.msra.mxu0 0
  %372 = vmatprep.subr.bf16.mxu0 0
  %373 = vmatpush1.bf16.msra.mxu0 0
  %374 = vmatprep.subr.bf16.mxu0 0
  %375 = vmatpush1.bf16.msra.mxu0 0
  %376 = vmatprep.subr.bf16.mxu0 0
  %377 = vmatpush1.bf16.msra.mxu0 0
  %378 = vmatprep.subr.bf16.mxu0 0
  %379 = vmatpush1.bf16.msra.mxu0 0
  %380 = vmatprep.mubr.bf16.mxu0 0
  %381 = vmatmul.mubr.bf16.gmra.mrb[0].mxu0 %v249
  %v382 = vpop.f32.mrb[0].mxu0
  %v383 = vadd.f32 %v85, %v382
  %v384 = vpop.f32.mrb[0].mxu0
  %v385 = vpop.f32.mrb[0].mxu0
  %v386 = vadd.f32 %v85, %v385
  %v387 = vpop.f32.mrb[0].mxu0
  %388 = vmatprep.mubr.bf16.mxu0 0
  %389 = vmatmul.mubr.bf16.gmra.mrb[0].mxu0 %v252
  %v390 = vpop.f32.mrb[0].mxu0
  %v391 = vadd.f32 %v85, %v390
  %v392 = vpop.f32.mrb[0].mxu0
  %v393 = vpop.f32.mrb[0].mxu0
  %v394 = vadd.f32 %v85, %v393
  %v395 = vpop.f32.mrb[0].mxu0
  %396 = vmatprep.mubr.bf16.mxu0 0
  %397 = vmatmul.mubr.bf16.gmra.mrb[0].mxu0 %v255
  %v398 = vpop.f32.mrb[0].mxu0
  %v399 = vadd.f32 %v85, %v398
  %v400 = vpop.f32.mrb[0].mxu0
  %v401 = vpop.f32.mrb[0].mxu0
  %v402 = vadd.f32 %v85, %v401
  %v403 = vpop.f32.mrb[0].mxu0
  %404 = vmatprep.mubr.bf16.mxu0 0
  %405 = vmatmul.mubr.bf16.gmra.mrb[0].mxu0 %v258
  %v406 = vpop.f32.mrb[0].mxu0
  %v407 = vadd.f32 %v85, %v406
  %v408 = vpop.f32.mrb[0].mxu0
  %v409 = vpop.f32.mrb[0].mxu0
  %v410 = vadd.f32 %v85, %v409
  %v411 = vpop.f32.mrb[0].mxu0
  %412 = vmatprep.mubr.bf16.mxu0 0
  %413 = vmatmul.mubr.bf16.gmra.mrb[0].mxu0 %v261
  %v414 = vpop.f32.mrb[0].mxu0
  %v415 = vadd.f32 %v85, %v414
  %v416 = vpop.f32.mrb[0].mxu0
  %v417 = vpop.f32.mrb[0].mxu0
  %v418 = vadd.f32 %v85, %v417
  %v419 = vpop.f32.mrb[0].mxu0
  %420 = vmatprep.mubr.bf16.mxu0 0
  %421 = vmatmul.mubr.bf16.gmra.mrb[0].mxu0 %v264
  %v422 = vpop.f32.mrb[0].mxu0
  %v423 = vadd.f32 %v85, %v422
  %v424 = vpop.f32.mrb[0].mxu0
  %v425 = vpop.f32.mrb[0].mxu0
  %v426 = vadd.f32 %v85, %v425
  %v427 = vpop.f32.mrb[0].mxu0
  %428 = vmatprep.mubr.bf16.mxu0 0
  %429 = vmatmul.mubr.bf16.gmra.mrb[0].mxu0 %v267
  %v430 = vpop.f32.mrb[0].mxu0
  %v431 = vadd.f32 %v85, %v430
  %v432 = vpop.f32.mrb[0].mxu0
  %v433 = vpop.f32.mrb[0].mxu0
  %v434 = vadd.f32 %v85, %v433
  %v435 = vpop.f32.mrb[0].mxu0
  %436 = vmatprep.mubr.bf16.mxu0 0
  %437 = vmatmul.mubr.bf16.gmra.mrb[0].mxu0 %v270
  %v438 = vpop.f32.mrb[0].mxu0
  %v439 = vadd.f32 %v85, %v438
  %v440 = vpop.f32.mrb[0].mxu0
  %v441 = vpop.f32.mrb[0].mxu0
  %v442 = vadd.f32 %v85, %v441
  %v443 = vpop.f32.mrb[0].mxu0
  %444 = vmatprep.mubr.bf16.mxu0 0
  %445 = vmatmul.mubr.bf16.gmra.mrb[0].mxu0 %v273
  %v446 = vpop.f32.mrb[0].mxu0
  %v447 = vadd.f32 %v85, %v446
  %v448 = vpop.f32.mrb[0].mxu0
  %v449 = vpop.f32.mrb[0].mxu0
  %v450 = vadd.f32 %v85, %v449
  %v451 = vpop.f32.mrb[0].mxu0
  %452 = vmatprep.mubr.bf16.mxu0 0
  %453 = vmatmul.mubr.bf16.gmra.mrb[0].mxu0 %v276
  %v454 = vpop.f32.mrb[0].mxu0
  %v455 = vadd.f32 %v85, %v454
  %v456 = vpop.f32.mrb[0].mxu0
  %v457 = vpop.f32.mrb[0].mxu0
  %v458 = vadd.f32 %v85, %v457
  %v459 = vpop.f32.mrb[0].mxu0
  %460 = vmatprep.mubr.bf16.mxu0 0
  %461 = vmatmul.mubr.bf16.gmra.mrb[0].mxu0 %v279
  %v462 = vpop.f32.mrb[0].mxu0
  %v463 = vadd.f32 %v85, %v462
  %v464 = vpop.f32.mrb[0].mxu0
  %v465 = vpop.f32.mrb[0].mxu0
  %v466 = vadd.f32 %v85, %v465
  %v467 = vpop.f32.mrb[0].mxu0
  %468 = vmatprep.mubr.bf16.mxu0 0
  %469 = vmatmul.mubr.bf16.gmra.mrb[0].mxu0 %v282
  %v470 = vpop.f32.mrb[0].mxu0
  %v471 = vadd.f32 %v85, %v470
  %v472 = vpop.f32.mrb[0].mxu0
  %v473 = vpop.f32.mrb[0].mxu0
  %v474 = vadd.f32 %v85, %v473
  %v475 = vpop.f32.mrb[0].mxu0
  %476 = vmatprep.mubr.bf16.mxu0 0
  %477 = vmatmul.mubr.bf16.gmra.mrb[0].mxu0 %v285
  %v478 = vpop.f32.mrb[0].mxu0
  %v479 = vadd.f32 %v85, %v478
  %v480 = vpop.f32.mrb[0].mxu0
  %v481 = vpop.f32.mrb[0].mxu0
  %v482 = vadd.f32 %v85, %v481
  %v483 = vpop.f32.mrb[0].mxu0
  %484 = vmatprep.mubr.bf16.mxu0 0
  %485 = vmatmul.mubr.bf16.gmra.mrb[0].mxu0 %v288
  %v486 = vpop.f32.mrb[0].mxu0
  %v487 = vadd.f32 %v85, %v486
  %v488 = vpop.f32.mrb[0].mxu0
  %v489 = vpop.f32.mrb[0].mxu0
  %v490 = vadd.f32 %v85, %v489
  %v491 = vpop.f32.mrb[0].mxu0
  %492 = vmatprep.mubr.bf16.mxu0 0
  %493 = vmatmul.mubr.bf16.gmra.mrb[0].mxu0 %v291
  %v494 = vpop.f32.mrb[0].mxu0
  %v495 = vadd.f32 %v85, %v494
  %v496 = vpop.f32.mrb[0].mxu0
  %v497 = vpop.f32.mrb[0].mxu0
  %v498 = vadd.f32 %v85, %v497
  %v499 = vpop.f32.mrb[0].mxu0
  %500 = vmatprep.mubr.bf16.mxu0 0
  %501 = vmatmul.mubr.bf16.gmra.mrb[0].mxu0 %v294
  %v502 = vpop.f32.mrb[0].mxu0
  %v503 = vadd.f32 %v85, %v502
  %v504 = vpop.f32.mrb[0].mxu0
  %v505 = vpop.f32.mrb[0].mxu0
  %v506 = vadd.f32 %v85, %v505
  %v507 = vpop.f32.mrb[0].mxu0
  %508 = vmatprep.mubr.bf16.mxu0 0
  %509 = vmatmul.mubr.bf16.gmra.mrb[0].mxu0 %v297
  %v510 = vpop.f32.mrb[0].mxu0
  %v511 = vadd.f32 %v85, %v510
  %v512 = vpop.f32.mrb[0].mxu0
  %v513 = vpop.f32.mrb[0].mxu0
  %v514 = vadd.f32 %v85, %v513
  %v515 = vpop.f32.mrb[0].mxu0
  %516 = vmatprep.mubr.bf16.mxu0 0
  %517 = vmatmul.mubr.bf16.gmra.mrb[0].mxu0 %v300
  %v518 = vpop.f32.mrb[0].mxu0
  %v519 = vadd.f32 %v85, %v518
  %v520 = vpop.f32.mrb[0].mxu0
  %v521 = vpop.f32.mrb[0].mxu0
  %v522 = vadd.f32 %v85, %v521
  %v523 = vpop.f32.mrb[0].mxu0
  %524 = vmatprep.mubr.bf16.mxu0 0
  %525 = vmatmul.mubr.bf16.gmra.mrb[0].mxu0 %v303
  %v526 = vpop.f32.mrb[0].mxu0
  %v527 = vadd.f32 %v85, %v526
  %v528 = vpop.f32.mrb[0].mxu0
  %v529 = vpop.f32.mrb[0].mxu0
  %v530 = vadd.f32 %v85, %v529
  %v531 = vpop.f32.mrb[0].mxu0
  %532 = vmatprep.mubr.bf16.mxu0 0
  %533 = vmatmul.mubr.bf16.gmra.mrb[0].mxu0 %v306
  %v534 = vpop.f32.mrb[0].mxu0
  %v535 = vadd.f32 %v85, %v534
  %v536 = vpop.f32.mrb[0].mxu0
  %v537 = vpop.f32.mrb[0].mxu0
  %v538 = vadd.f32 %v85, %v537
  %v539 = vpop.f32.mrb[0].mxu0
  %540 = vmatprep.mubr.bf16.mxu0 0
  %541 = vmatmul.mubr.bf16.gmra.mrb[0].mxu0 %v309
  %v542 = vpop.f32.mrb[0].mxu0
  %v543 = vadd.f32 %v85, %v542
  %v544 = vpop.f32.mrb[0].mxu0
  %v545 = vpop.f32.mrb[0].mxu0
  %v546 = vadd.f32 %v85, %v545
  %v547 = vpop.f32.mrb[0].mxu0
  %548 = vmatprep.mubr.bf16.mxu0 0
  %549 = vmatmul.mubr.bf16.gmra.mrb[0].mxu0 %v312
  %v550 = vpop.f32.mrb[0].mxu0
  %v551 = vadd.f32 %v85, %v550
  %v552 = vpop.f32.mrb[0].mxu0
  %v553 = vpop.f32.mrb[0].mxu0
  %v554 = vadd.f32 %v85, %v553
  %v555 = vpop.f32.mrb[0].mxu0
  %556 = vmatprep.mubr.bf16.mxu0 0
  %557 = vmatmul.mubr.bf16.gmra.mrb[0].mxu0 %v315
  %v558 = vpop.f32.mrb[0].mxu0
  %v559 = vadd.f32 %v85, %v558
  %v560 = vpop.f32.mrb[0].mxu0
  %v561 = vpop.f32.mrb[0].mxu0
  %v562 = vadd.f32 %v85, %v561
  %v563 = vpop.f32.mrb[0].mxu0
  %564 = vmatprep.mubr.bf16.mxu0 0
  %565 = vmatmul.mubr.bf16.gmra.mrb[0].mxu0 %v318
  %v566 = vpop.f32.mrb[0].mxu0
  %v567 = vadd.f32 %v85, %v566
  %v568 = vpop.f32.mrb[0].mxu0
  %v569 = vpop.f32.mrb[0].mxu0
  %v570 = vadd.f32 %v85, %v569
  %v571 = vpop.f32.mrb[0].mxu0
  %572 = vmatprep.mubr.bf16.mxu0 0
  %573 = vmatmul.mubr.bf16.gmra.mrb[0].mxu0 %v321
  %v574 = vpop.f32.mrb[0].mxu0
  %v575 = vadd.f32 %v85, %v574
  %v576 = vpop.f32.mrb[0].mxu0
  %v577 = vpop.f32.mrb[0].mxu0
  %v578 = vadd.f32 %v85, %v577
  %v579 = vpop.f32.mrb[0].mxu0
  %580 = vmatprep.mubr.bf16.mxu0 0
  %581 = vmatmul.mubr.bf16.gmra.mrb[0].mxu0 %v324
  %v582 = vpop.f32.mrb[0].mxu0
  %v583 = vadd.f32 %v85, %v582
  %v584 = vpop.f32.mrb[0].mxu0
  %v585 = vpop.f32.mrb[0].mxu0
  %v586 = vadd.f32 %v85, %v585
  %v587 = vpop.f32.mrb[0].mxu0
  %588 = vmatprep.mubr.bf16.mxu0 0
  %589 = vmatmul.mubr.bf16.gmra.mrb[0].mxu0 %v327
  %v590 = vpop.f32.mrb[0].mxu0
  %v591 = vadd.f32 %v85, %v590
  %v592 = vpop.f32.mrb[0].mxu0
  %v593 = vpop.f32.mrb[0].mxu0
  %v594 = vadd.f32 %v85, %v593
  %v595 = vpop.f32.mrb[0].mxu0
  %596 = vmatprep.mubr.bf16.mxu0 0
  %597 = vmatmul.mubr.bf16.gmra.mrb[0].mxu0 %v330
  %v598 = vpop.f32.mrb[0].mxu0
  %v599 = vadd.f32 %v85, %v598
  %v600 = vpop.f32.mrb[0].mxu0
  %v601 = vpop.f32.mrb[0].mxu0
  %v602 = vadd.f32 %v85, %v601
  %v603 = vpop.f32.mrb[0].mxu0
  %604 = vmatprep.mubr.bf16.mxu0 0
  %605 = vmatmul.mubr.bf16.gmra.mrb[0].mxu0 %v333
  %v606 = vpop.f32.mrb[0].mxu0
  %v607 = vadd.f32 %v85, %v606
  %v608 = vpop.f32.mrb[0].mxu0
  %v609 = vpop.f32.mrb[0].mxu0
  %v610 = vadd.f32 %v85, %v609
  %v611 = vpop.f32.mrb[0].mxu0
  %612 = vmatprep.mubr.bf16.mxu0 0
  %613 = vmatmul.mubr.bf16.gmra.mrb[0].mxu0 %v336
  %v614 = vpop.f32.mrb[0].mxu0
  %v615 = vadd.f32 %v85, %v614
  %v616 = vpop.f32.mrb[0].mxu0
  %v617 = vpop.f32.mrb[0].mxu0
  %v618 = vadd.f32 %v85, %v617
  %v619 = vpop.f32.mrb[0].mxu0
  %620 = vmatprep.mubr.bf16.mxu0 0
  %621 = vmatmul.mubr.bf16.gmra.mrb[0].mxu0 %v339
  %v622 = vpop.f32.mrb[0].mxu0
  %v623 = vadd.f32 %v85, %v622
  %v624 = vpop.f32.mrb[0].mxu0
  %v625 = vpop.f32.mrb[0].mxu0
  %v626 = vadd.f32 %v85, %v625
  %v627 = vpop.f32.mrb[0].mxu0
  %628 = vmatprep.mubr.bf16.mxu0 0
  %629 = vmatmul.mubr.bf16.gmra.mrb[0].mxu0 %v342
  %v630 = vpop.f32.mrb[0].mxu0
  %v631 = vadd.f32 %v85, %v630
  %v632 = vpop.f32.mrb[0].mxu0
  %v633 = vpop.f32.mrb[0].mxu0
  %v634 = vadd.f32 %v85, %v633
  %v635 = vpop.f32.mrb[0].mxu0
  %636 = vdwg.mxu0
  %v637 = vmax.f32 %v383, 0.0
  %v638 = vmax.f32 %v386, 0.0
  %v639 = vmax.f32 %v391, 0.0
  %v640 = vmax.f32 %v394, 0.0
  %v641 = vmax.f32 %v399, 0.0
  %v642 = vmax.f32 %v402, 0.0
  %v643 = vmax.f32 %v407, 0.0
  %v644 = vmax.f32 %v410, 0.0
  %v645 = vmax.f32 %v415, 0.0
  %v646 = vmax.f32 %v418, 0.0
  %v647 = vmax.f32 %v423, 0.0
  %v648 = vmax.f32 %v426, 0.0
  %v649 = vmax.f32 %v431, 0.0
  %v650 = vmax.f32 %v434, 0.0
  %v651 = vmax.f32 %v439, 0.0
  %v652 = vmax.f32 %v442, 0.0
  %v653 = vmax.f32 %v447, 0.0
  %v654 = vmax.f32 %v450, 0.0
  %v655 = vmax.f32 %v455, 0.0
  %v656 = vmax.f32 %v458, 0.0
  %v657 = vmax.f32 %v463, 0.0
  %v658 = vmax.f32 %v466, 0.0
  %v659 = vmax.f32 %v471, 0.0
  %v660 = vmax.f32 %v474, 0.0
  %v661 = vmax.f32 %v479, 0.0
  %v662 = vmax.f32 %v482, 0.0
  %v663 = vmax.f32 %v487, 0.0
  %v664 = vmax.f32 %v490, 0.0
  %v665 = vmax.f32 %v495, 0.0
  %v666 = vmax.f32 %v498, 0.0
  %v667 = vmax.f32 %v503, 0.0
  %v668 = vmax.f32 %v506, 0.0
  %v669 = vmax.f32 %v511, 0.0
  %v670 = vmax.f32 %v514, 0.0
  %v671 = vmax.f32 %v519, 0.0
  %v672 = vmax.f32 %v522, 0.0
  %v673 = vmax.f32 %v527, 0.0
  %v674 = vmax.f32 %v530, 0.0
  %v675 = vmax.f32 %v535, 0.0
  %v676 = vmax.f32 %v538, 0.0
  %v677 = vmax.f32 %v543, 0.0
  %v678 = vmax.f32 %v546, 0.0
  %v679 = vmax.f32 %v551, 0.0
  %v680 = vmax.f32 %v554, 0.0
  %v681 = vmax.f32 %v559, 0.0
  %v682 = vmax.f32 %v562, 0.0
  %v683 = vmax.f32 %v567, 0.0
  %v684 = vmax.f32 %v570, 0.0
  %v685 = vmax.f32 %v575, 0.0
  %v686 = vmax.f32 %v578, 0.0
  %v687 = vmax.f32 %v583, 0.0
  %v688 = vmax.f32 %v586, 0.0
  %v689 = vmax.f32 %v591, 0.0
  %v690 = vmax.f32 %v594, 0.0
  %v691 = vmax.f32 %v599, 0.0
  %v692 = vmax.f32 %v602, 0.0
  %v693 = vmax.f32 %v607, 0.0
  %v694 = vmax.f32 %v610, 0.0
  %v695 = vmax.f32 %v615, 0.0
  %v696 = vmax.f32 %v618, 0.0
  %v697 = vmax.f32 %v623, 0.0
  %v698 = vmax.f32 %v626, 0.0
  %v699 = vmax.f32 %v631, 0.0
  %v700 = vmax.f32 %v634, 0.0
  %v701 = vpack.c.bf16 %v638, %v637
  %v702 = vpack.c.bf16 %v640, %v639
  %v703 = vpack.c.bf16 %v642, %v641
  %v704 = vpack.c.bf16 %v644, %v643
  %v705 = vpack.c.bf16 %v646, %v645
  %v706 = vpack.c.bf16 %v648, %v647
  %v707 = vpack.c.bf16 %v650, %v649
  %v708 = vpack.c.bf16 %v652, %v651
  %v709 = vpack.c.bf16 %v654, %v653
  %v710 = vpack.c.bf16 %v656, %v655
  %v711 = vpack.c.bf16 %v658, %v657
  %v712 = vpack.c.bf16 %v660, %v659
  %v713 = vpack.c.bf16 %v662, %v661
  %v714 = vpack.c.bf16 %v664, %v663
  %v715 = vpack.c.bf16 %v666, %v665
  %v716 = vpack.c.bf16 %v668, %v667
  %v717 = vpack.c.bf16 %v670, %v669
  %v718 = vpack.c.bf16 %v672, %v671
  %v719 = vpack.c.bf16 %v674, %v673
  %v720 = vpack.c.bf16 %v676, %v675
  %v721 = vpack.c.bf16 %v678, %v677
  %v722 = vpack.c.bf16 %v680, %v679
  %v723 = vpack.c.bf16 %v682, %v681
  %v724 = vpack.c.bf16 %v684, %v683
  %v725 = vpack.c.bf16 %v686, %v685
  %v726 = vpack.c.bf16 %v688, %v687
  %v727 = vpack.c.bf16 %v690, %v689
  %v728 = vpack.c.bf16 %v692, %v691
  %v729 = vpack.c.bf16 %v694, %v693
  %v730 = vpack.c.bf16 %v696, %v695
  %v731 = vpack.c.bf16 %v698, %v697
  %v732 = vpack.c.bf16 %v700, %v699
  %v765 = vunpack.c.l.b16 %v701
  %v766 = vunpack.c.h.b16 %v701
  %v767 = vunpack.c.l.b16 %v702
  %v768 = vunpack.c.h.b16 %v702
  %v769 = vunpack.c.l.b16 %v703
  %v770 = vunpack.c.h.b16 %v703
  %v771 = vunpack.c.l.b16 %v704
  %v772 = vunpack.c.h.b16 %v704
  %v773 = vunpack.c.l.b16 %v705
  %v774 = vunpack.c.h.b16 %v705
  %v775 = vunpack.c.l.b16 %v706
  %v776 = vunpack.c.h.b16 %v706
  %v777 = vunpack.c.l.b16 %v707
  %v778 = vunpack.c.h.b16 %v707
  %v779 = vunpack.c.l.b16 %v708
  %v780 = vunpack.c.h.b16 %v708
  %v781 = vunpack.c.l.b16 %v709
  %v782 = vunpack.c.h.b16 %v709
  %v783 = vunpack.c.l.b16 %v710
  %v784 = vunpack.c.h.b16 %v710
  %v785 = vunpack.c.l.b16 %v711
  %v786 = vunpack.c.h.b16 %v711
  %v787 = vunpack.c.l.b16 %v712
  %v788 = vunpack.c.h.b16 %v712
  %v789 = vunpack.c.l.b16 %v713
  %v790 = vunpack.c.h.b16 %v713
  %v791 = vunpack.c.l.b16 %v714
  %v792 = vunpack.c.h.b16 %v714
  %v793 = vunpack.c.l.b16 %v715
  %v794 = vunpack.c.h.b16 %v715
  %v795 = vunpack.c.l.b16 %v716
  %v796 = vunpack.c.h.b16 %v716
  %v797 = vunpack.c.l.b16 %v717
  %v798 = vunpack.c.h.b16 %v717
  %v799 = vunpack.c.l.b16 %v718
  %v800 = vunpack.c.h.b16 %v718
  %v801 = vunpack.c.l.b16 %v719
  %v802 = vunpack.c.h.b16 %v719
  %v803 = vunpack.c.l.b16 %v720
  %v804 = vunpack.c.h.b16 %v720
  %v805 = vunpack.c.l.b16 %v721
  %v806 = vunpack.c.h.b16 %v721
  %v807 = vunpack.c.l.b16 %v722
  %v808 = vunpack.c.h.b16 %v722
  %v809 = vunpack.c.l.b16 %v723
  %v810 = vunpack.c.h.b16 %v723
  %v811 = vunpack.c.l.b16 %v724
  %v812 = vunpack.c.h.b16 %v724
  %v813 = vunpack.c.l.b16 %v725
  %v814 = vunpack.c.h.b16 %v725
  %v815 = vunpack.c.l.b16 %v726
  %v816 = vunpack.c.h.b16 %v726
  %v817 = vunpack.c.l.b16 %v727
  %v818 = vunpack.c.h.b16 %v727
  %v819 = vunpack.c.l.b16 %v728
  %v820 = vunpack.c.h.b16 %v728
  %v821 = vunpack.c.l.b16 %v729
  %v822 = vunpack.c.h.b16 %v729
  %v823 = vunpack.c.l.b16 %v730
  %v824 = vunpack.c.h.b16 %v730
  %v825 = vunpack.c.l.b16 %v731
  %v826 = vunpack.c.h.b16 %v731
  %v827 = vunpack.c.l.b16 %v732
  %v828 = vunpack.c.h.b16 %v732
  %v829 = vpack.c.b16 %v765, %v765
  %v830 = vpack.c.b16 %v766, %v766
  %v831 = vpack.c.b16 %v767, %v767
  %v832 = vpack.c.b16 %v768, %v768
  %v833 = vpack.c.b16 %v769, %v769
  %v834 = vpack.c.b16 %v770, %v770
  %v835 = vpack.c.b16 %v771, %v771
  %v836 = vpack.c.b16 %v772, %v772
  %v837 = vpack.c.b16 %v773, %v773
  %v838 = vpack.c.b16 %v774, %v774
  %v839 = vpack.c.b16 %v775, %v775
  %v840 = vpack.c.b16 %v776, %v776
  %v841 = vpack.c.b16 %v777, %v777
  %v842 = vpack.c.b16 %v778, %v778
  %v843 = vpack.c.b16 %v779, %v779
  %v844 = vpack.c.b16 %v780, %v780
  %v845 = vpack.c.b16 %v781, %v781
  %v846 = vpack.c.b16 %v782, %v782
  %v847 = vpack.c.b16 %v783, %v783
  %v848 = vpack.c.b16 %v784, %v784
  %v849 = vpack.c.b16 %v785, %v785
  %v850 = vpack.c.b16 %v786, %v786
  %v851 = vpack.c.b16 %v787, %v787
  %v852 = vpack.c.b16 %v788, %v788
  %v853 = vpack.c.b16 %v789, %v789
  %v854 = vpack.c.b16 %v790, %v790
  %v855 = vpack.c.b16 %v791, %v791
  %v856 = vpack.c.b16 %v792, %v792
  %v857 = vpack.c.b16 %v793, %v793
  %v858 = vpack.c.b16 %v794, %v794
  %v859 = vpack.c.b16 %v795, %v795
  %v860 = vpack.c.b16 %v796, %v796
  %v861 = vpack.c.b16 %v797, %v797
  %v862 = vpack.c.b16 %v798, %v798
  %v863 = vpack.c.b16 %v799, %v799
  %v864 = vpack.c.b16 %v800, %v800
  %v865 = vpack.c.b16 %v801, %v801
  %v866 = vpack.c.b16 %v802, %v802
  %v867 = vpack.c.b16 %v803, %v803
  %v868 = vpack.c.b16 %v804, %v804
  %v869 = vpack.c.b16 %v805, %v805
  %v870 = vpack.c.b16 %v806, %v806
  %v871 = vpack.c.b16 %v807, %v807
  %v872 = vpack.c.b16 %v808, %v808
  %v873 = vpack.c.b16 %v809, %v809
  %v874 = vpack.c.b16 %v810, %v810
  %v875 = vpack.c.b16 %v811, %v811
  %v876 = vpack.c.b16 %v812, %v812
  %v877 = vpack.c.b16 %v813, %v813
  %v878 = vpack.c.b16 %v814, %v814
  %v879 = vpack.c.b16 %v815, %v815
  %v880 = vpack.c.b16 %v816, %v816
  %v881 = vpack.c.b16 %v817, %v817
  %v882 = vpack.c.b16 %v818, %v818
  %v883 = vpack.c.b16 %v819, %v819
  %v884 = vpack.c.b16 %v820, %v820
  %v885 = vpack.c.b16 %v821, %v821
  %v886 = vpack.c.b16 %v822, %v822
  %v887 = vpack.c.b16 %v823, %v823
  %v888 = vpack.c.b16 %v824, %v824
  %v889 = vpack.c.b16 %v825, %v825
  %v890 = vpack.c.b16 %v826, %v826
  %v891 = vpack.c.b16 %v827, %v827
  %v892 = vpack.c.b16 %v828, %v828
  %957 = vst [vmem:[%s3] sm:$0xf] %v829
  %958 = vst [vmem:[%s3 + $0x4] sm:$0xf] %v830
  %959 = vst [vmem:[%s3 + $0x8] sm:$0xf] %v831
  %960 = vst [vmem:[%s3 + $0xc] sm:$0xf] %v832
  %961 = vst [vmem:[%s3 + $0x10] sm:$0xf] %v833
  %962 = vst [vmem:[%s3 + $0x14] sm:$0xf] %v834
  %963 = vst [vmem:[%s3 + $0x18] sm:$0xf] %v835
  %964 = vst [vmem:[%s3 + $0x1c] sm:$0xf] %v836
  %965 = vst [vmem:[%s3 + $0x20] sm:$0xf] %v837
  %966 = vst [vmem:[%s3 + $0x24] sm:$0xf] %v838
  %967 = vst [vmem:[%s3 + $0x28] sm:$0xf] %v839
  %968 = vst [vmem:[%s3 + $0x2c] sm:$0xf] %v840
  %969 = vst [vmem:[%s3 + $0x30] sm:$0xf] %v841
  %970 = vst [vmem:[%s3 + $0x34] sm:$0xf] %v842
  %971 = vst [vmem:[%s3 + $0x38] sm:$0xf] %v843
  %972 = vst [vmem:[%s3 + $0x3c] sm:$0xf] %v844
  %973 = vst [vmem:[%s3 + $0x40] sm:$0xf] %v845
  %974 = vst [vmem:[%s3 + $0x44] sm:$0xf] %v846
  %975 = vst [vmem:[%s3 + $0x48] sm:$0xf] %v847
  %976 = vst [vmem:[%s3 + $0x4c] sm:$0xf] %v848
  %977 = vst [vmem:[%s3 + $0x50] sm:$0xf] %v849
  %978 = vst [vmem:[%s3 + $0x54] sm:$0xf] %v850
  %979 = vst [vmem:[%s3 + $0x58] sm:$0xf] %v851
  %980 = vst [vmem:[%s3 + $0x5c] sm:$0xf] %v852
  %981 = vst [vmem:[%s3 + $0x60] sm:$0xf] %v853
  %982 = vst [vmem:[%s3 + $0x64] sm:$0xf] %v854
  %983 = vst [vmem:[%s3 + $0x68] sm:$0xf] %v855
  %984 = vst [vmem:[%s3 + $0x6c] sm:$0xf] %v856
  %985 = vst [vmem:[%s3 + $0x70] sm:$0xf] %v857
  %986 = vst [vmem:[%s3 + $0x74] sm:$0xf] %v858
  %987 = vst [vmem:[%s3 + $0x78] sm:$0xf] %v859
  %988 = vst [vmem:[%s3 + $0x7c] sm:$0xf] %v860
  %989 = vst [vmem:[%s3 + $0x80] sm:$0xf] %v861
  %990 = vst [vmem:[%s3 + $0x84] sm:$0xf] %v862
  %991 = vst [vmem:[%s3 + $0x88] sm:$0xf] %v863
  %992 = vst [vmem:[%s3 + $0x8c] sm:$0xf] %v864
  %993 = vst [vmem:[%s3 + $0x90] sm:$0xf] %v865
  %994 = vst [vmem:[%s3 + $0x94] sm:$0xf] %v866
  %995 = vst [vmem:[%s3 + $0x98] sm:$0xf] %v867
  %996 = vst [vmem:[%s3 + $0x9c] sm:$0xf] %v868
  %997 = vst [vmem:[%s3 + $0xa0] sm:$0xf] %v869
  %998 = vst [vmem:[%s3 + $0xa4] sm:$0xf] %v870
  %999 = vst [vmem:[%s3 + $0xa8] sm:$0xf] %v871
  %1000 = vst [vmem:[%s3 + $0xac] sm:$0xf] %v872
  %1001 = vst [vmem:[%s3 + $0xb0] sm:$0xf] %v873
  %1002 = vst [vmem:[%s3 + $0xb4] sm:$0xf] %v874
  %1003 = vst [vmem:[%s3 + $0xb8] sm:$0xf] %v875
  %1004 = vst [vmem:[%s3 + $0xbc] sm:$0xf] %v876
  %1005 = vst [vmem:[%s3 + $0xc0] sm:$0xf] %v877
  %1006 = vst [vmem:[%s3 + $0xc4] sm:$0xf] %v878
  %1007 = vst [vmem:[%s3 + $0xc8] sm:$0xf] %v879
  %1008 = vst [vmem:[%s3 + $0xcc] sm:$0xf] %v880
  %1009 = vst [vmem:[%s3 + $0xd0] sm:$0xf] %v881
  %1010 = vst [vmem:[%s3 + $0xd4] sm:$0xf] %v882
  %1011 = vst [vmem:[%s3 + $0xd8] sm:$0xf] %v883
  %1012 = vst [vmem:[%s3 + $0xdc] sm:$0xf] %v884
  %1013 = vst [vmem:[%s3 + $0xe0] sm:$0xf] %v885
  %1014 = vst [vmem:[%s3 + $0xe4] sm:$0xf] %v886
  %1015 = vst [vmem:[%s3 + $0xe8] sm:$0xf] %v887
  %1016 = vst [vmem:[%s3 + $0xec] sm:$0xf] %v888
  %1017 = vst [vmem:[%s3 + $0xf0] sm:$0xf] %v889
  %1018 = vst [vmem:[%s3 + $0xf4] sm:$0xf] %v890
  %1019 = vst [vmem:[%s3 + $0xf8] sm:$0xf] %v891
  %1020 = vst [vmem:[%s3 + $0xfc] sm:$0xf] %v892
  // Predicated region
  $region14: #{bottleneck_forward.3} parent=0 // pred_check
    _
  $region15: #{bottleneck_forward.3} parent=0 // pred_check_branch
    %1022 = sbr.rel (0) target = $region17
  $region16: #{bottleneck_forward.3} parent=0 // pred_region
    _
  $region17: #{bottleneck_forward.3} parent=0 // pred_fallthru
    _
  // Predicated region
  $region18: #{bottleneck_forward.3} parent=0 // pred_check
    _
  $region19: #{bottleneck_forward.3} parent=0 // pred_check_branch
    %1024 = sbr.rel (0) target = $region21
  $region20: #{bottleneck_forward.3} parent=0 // pred_region
    _
  $region21: #{bottleneck_forward.3} parent=0 // pred_fallthru
    _

// kernel: bottleneck_forward.5
$region0: #{bottleneck_forward.5}
  #allocation0 [shape = 'u32[]', space=smem, size = 0x4, offset = 0x4, fixed_abs, tag = 'smem constant byte address 0x4 - core index']
  #allocation1 [shape = 'u32[144,128]{1,0:T(1,128)}', space=vmem, size = 0x12000, scoped, tag = 'internal scratch']
  %s0 = inlined_call_operand.vmem [shape: bf16[128,8], index: 0, kind: input, shape index: {}]
  %s1 = inlined_call_operand.vmem [shape: bf16[8,128], index: 1, kind: input, shape index: {}]
  %s2 = inlined_call_operand.vmem [shape: f32[1,128], index: 2, kind: input, shape index: {}]
  %s3 = inlined_call_operand.vmem [shape: bf16[128,4], index: 3, kind: input, shape index: {}]
  %s4 = inlined_call_operand.vmem [shape: bf16[4,128], index: 4, kind: input, shape index: {}]
  %s5 = inlined_call_operand.hbm [shape: f32[128,128], index: 5, kind: output, shape index: {}]
  %s6 = sld [smem:[#allocation0]]
  $region30: #{bottleneck_forward.5} parent=0
    _
  %s8 = ssub.s32 1, %s6
  %s9 = scalar_select 0, %s8, %s6
  $region1: #{bottleneck_forward.5} parent=0
    #allocation2 [shape = 'u8[65536]{0}', space=vmem, size = 0x10000, scoped, tag = 'output window, operand 0, single buffered']
    #allocation3 [shape = 's32[1]{0}', space=sflag, size = 0x4, scoped, tag = 'scoped memory for bottleneck_forward.5']
    %10 = vsyncpa [#allocation3], 0
    // Predicated region
    $region2: #{bottleneck_forward.5} parent=1 // pred_check
      _
    $region3: #{bottleneck_forward.5} parent=1 // pred_check_branch
      %12 = sbr.rel (0) target = $region5
    $region4: #{bottleneck_forward.5} parent=1 // pred_region
      _
    $region5: #{bottleneck_forward.5} parent=1 // pred_fallthru
      _
    // Predicated region
    $region6: #{bottleneck_forward.5} parent=1 // pred_check
      _
    $region7: #{bottleneck_forward.5} parent=1 // pred_check_branch
      %14 = sbr.rel (0) target = $region9
    $region8: #{bottleneck_forward.5} parent=1 // pred_region
      _
    $region9: #{bottleneck_forward.5} parent=1 // pred_fallthru
      _
    // Predicated region
    $region10: #{bottleneck_forward.5} parent=1 // pred_check
      _
    $region11: #{bottleneck_forward.5} parent=1 // pred_check_branch
      %16 = sbr.rel (0) target = $region13
    $region12: #{bottleneck_forward.5} parent=1 // pred_region
      _
    $region13: #{bottleneck_forward.5} parent=1 // pred_fallthru
      _
    // Predicated region
    $region14: #{bottleneck_forward.5} parent=1 // pred_check
      _
    $region15: #{bottleneck_forward.5} parent=1 // pred_check_branch
      %18 = sbr.rel (0) target = $region17
    $region16: #{bottleneck_forward.5} parent=1 // pred_region
      _
    $region17: #{bottleneck_forward.5} parent=1 // pred_fallthru
      _
    // Predicated region
    $region18: #{bottleneck_forward.5} parent=1 // pred_check
      _
    $region19: #{bottleneck_forward.5} parent=1 // pred_check_branch
      %20 = sbr.rel (0) target = $region21
    $region20: #{bottleneck_forward.5} parent=1 // pred_region
      _
    $region21: #{bottleneck_forward.5} parent=1 // pred_fallthru
      _
    %v22 = vld [vmem:[%s0] sm:$0xf]
    %v23 = vld [vmem:[%s0 + $0x4] sm:$0xf]
    %v24 = vld [vmem:[%s0 + $0x8] sm:$0xf]
    %v25 = vld [vmem:[%s0 + $0xc] sm:$0xf]
    %v26 = vld [vmem:[%s0 + $0x10] sm:$0xf]
    %v27 = vld [vmem:[%s0 + $0x14] sm:$0xf]
    %v28 = vld [vmem:[%s0 + $0x18] sm:$0xf]
    %v29 = vld [vmem:[%s0 + $0x1c] sm:$0xf]
    %v30 = vld [vmem:[%s0 + $0x20] sm:$0xf]
    %v31 = vld [vmem:[%s0 + $0x24] sm:$0xf]
    %v32 = vld [vmem:[%s0 + $0x28] sm:$0xf]
    %v33 = vld [vmem:[%s0 + $0x2c] sm:$0xf]
    %v34 = vld [vmem:[%s0 + $0x30] sm:$0xf]
    %v35 = vld [vmem:[%s0 + $0x34] sm:$0xf]
    %v36 = vld [vmem:[%s0 + $0x38] sm:$0xf]
    %v37 = vld [vmem:[%s0 + $0x3c] sm:$0xf]
    %v38 = vld [vmem:[%s1] sm:$0xf]
    %v39 = vld [vmem:[%s2] sm:$0x1]
    %v41 = vlaneseq
    %v42 = vshrl.u32 %v41, 7
    %v43 = vsub.s32 0, %v42
    %v44 = vrot.slane %v39, %v43
    %v62 = vunpack.c.l.b16 %v22
    %v63 = vunpack.c.l.b16 %v23
    %v64 = vunpack.c.l.b16 %v24
    %v65 = vunpack.c.l.b16 %v25
    %v66 = vunpack.c.l.b16 %v26
    %v67 = vunpack.c.l.b16 %v27
    %v68 = vunpack.c.l.b16 %v28
    %v69 = vunpack.c.l.b16 %v29
    %v70 = vunpack.c.l.b16 %v30
    %v71 = vunpack.c.l.b16 %v31
    %v72 = vunpack.c.l.b16 %v32
    %v73 = vunpack.c.l.b16 %v33
    %v74 = vunpack.c.l.b16 %v34
    %v75 = vunpack.c.l.b16 %v35
    %v76 = vunpack.c.l.b16 %v36
    %v77 = vunpack.c.l.b16 %v37
    %v78 = vpack.c.b16 %v63, %v62
    %v79 = vpack.c.b16 %v65, %v64
    %v80 = vpack.c.b16 %v67, %v66
    %v81 = vpack.c.b16 %v69, %v68
    %v82 = vpack.c.b16 %v71, %v70
    %v83 = vpack.c.b16 %v73, %v72
    %v84 = vpack.c.b16 %v75, %v74
    %v85 = vpack.c.b16 %v77, %v76
    %vm86 = vcmask 64512
    %v88 = vsel %vm86, %v78, 0
    %v91 = vsel %vm86, %v79, 0
    %v94 = vsel %vm86, %v80, 0
    %v97 = vsel %vm86, %v81, 0
    %v100 = vsel %vm86, %v82, 0
    %v103 = vsel %vm86, %v83, 0
    %v106 = vsel %vm86, %v84, 0
    %v109 = vsel %vm86, %v85, 0
    %vm111 = vcmask 1043456
    %v113 = vsel %vm111, %v38, 0
    %115 = vmatprep.subr.bf16.mxu0 0
    %116 = vmatpush1.bf16.msra.mxu0 %v113
    %117 = vmatprep.subr.bf16.mxu0 0
    %118 = vmatpush1.bf16.msra.mxu0 0
    %119 = vmatprep.subr.bf16.mxu0 0
    %120 = vmatpush1.bf16.msra.mxu0 0
    %121 = vmatprep.subr.bf16.mxu0 0
    %122 = vmatpush1.bf16.msra.mxu0 0
    %123 = vmatprep.subr.bf16.mxu0 0
    %124 = vmatpush1.bf16.msra.mxu0 0
    %125 = vmatprep.subr.bf16.mxu0 0
    %126 = vmatpush1.bf16.msra.mxu0 0
    %127 = vmatprep.subr.bf16.mxu0 0
    %128 = vmatpush1.bf16.msra.mxu0 0
    %129 = vmatprep.subr.bf16.mxu0 0
    %130 = vmatpush1.bf16.msra.mxu0 0
    %131 = vmatprep.subr.bf16.mxu0 0
    %132 = vmatpush1.bf16.msra.mxu0 0
    %133 = vmatprep.subr.bf16.mxu0 0
    %134 = vmatpush1.bf16.msra.mxu0 0
    %135 = vmatprep.subr.bf16.mxu0 0
    %136 = vmatpush1.bf16.msra.mxu0 0
    %137 = vmatprep.subr.bf16.mxu0 0
    %138 = vmatpush1.bf16.msra.mxu0 0
    %139 = vmatprep.subr.bf16.mxu0 0
    %140 = vmatpush1.bf16.msra.mxu0 0
    %141 = vmatprep.subr.bf16.mxu0 0
    %142 = vmatpush1.bf16.msra.mxu0 0
    %143 = vmatprep.subr.bf16.mxu0 0
    %144 = vmatpush1.bf16.msra.mxu0 0
    %145 = vmatprep.subr.bf16.mxu0 0
    %146 = vmatpush1.bf16.msra.mxu0 0
    %147 = vmatprep.mubr.bf16.mxu0 0
    %148 = vmatmul.mubr.bf16.gmra.mrb[0].mxu0 %v88
    %v149 = vpop.f32.mrb[0].mxu0
    %v150 = vadd.f32 %v44, %v149
    %v151 = vpop.f32.mrb[0].mxu0
    %v152 = vpop.f32.mrb[0].mxu0
    %v153 = vadd.f32 %v44, %v152
    %v154 = vpop.f32.mrb[0].mxu0
    %155 = vmatprep.mubr.bf16.mxu0 0
    %156 = vmatmul.mubr.bf16.gmra.mrb[0].mxu0 %v91
    %v157 = vpop.f32.mrb[0].mxu0
    %v158 = vadd.f32 %v44, %v157
    %v159 = vpop.f32.mrb[0].mxu0
    %v160 = vpop.f32.mrb[0].mxu0
    %v161 = vadd.f32 %v44, %v160
    %v162 = vpop.f32.mrb[0].mxu0
    %163 = vmatprep.mubr.bf16.mxu0 0
    %164 = vmatmul.mubr.bf16.gmra.mrb[0].mxu0 %v94
    %v165 = vpop.f32.mrb[0].mxu0
    %v166 = vadd.f32 %v44, %v165
    %v167 = vpop.f32.mrb[0].mxu0
    %v168 = vpop.f32.mrb[0].mxu0
    %v169 = vadd.f32 %v44, %v168
    %v170 = vpop.f32.mrb[0].mxu0
    %171 = vmatprep.mubr.bf16.mxu0 0
    %172 = vmatmul.mubr.bf16.gmra.mrb[0].mxu0 %v97
    %v173 = vpop.f32.mrb[0].mxu0
    %v174 = vadd.f32 %v44, %v173
    %v175 = vpop.f32.mrb[0].mxu0
    %v176 = vpop.f32.mrb[0].mxu0
    %v177 = vadd.f32 %v44, %v176
    %v178 = vpop.f32.mrb[0].mxu0
    %179 = vmatprep.mubr.bf16.mxu0 0
    %180 = vmatmul.mubr.bf16.gmra.mrb[0].mxu0 %v100
    %v181 = vpop.f32.mrb[0].mxu0
    %v182 = vadd.f32 %v44, %v181
    %v183 = vpop.f32.mrb[0].mxu0
    %v184 = vpop.f32.mrb[0].mxu0
    %v185 = vadd.f32 %v44, %v184
    %v186 = vpop.f32.mrb[0].mxu0
    %187 = vmatprep.mubr.bf16.mxu0 0
    %188 = vmatmul.mubr.bf16.gmra.mrb[0].mxu0 %v103
    %v189 = vpop.f32.mrb[0].mxu0
    %v190 = vadd.f32 %v44, %v189
    %v191 = vpop.f32.mrb[0].mxu0
    %v192 = vpop.f32.mrb[0].mxu0
    %v193 = vadd.f32 %v44, %v192
    %v194 = vpop.f32.mrb[0].mxu0
    %195 = vmatprep.mubr.bf16.mxu0 0
    %196 = vmatmul.mubr.bf16.gmra.mrb[0].mxu0 %v106
    %v197 = vpop.f32.mrb[0].mxu0
    %v198 = vadd.f32 %v44, %v197
    %v199 = vpop.f32.mrb[0].mxu0
    %v200 = vpop.f32.mrb[0].mxu0
    %v201 = vadd.f32 %v44, %v200
    %v202 = vpop.f32.mrb[0].mxu0
    %203 = vmatprep.mubr.bf16.mxu0 0
    %204 = vmatmul.mubr.bf16.gmra.mrb[0].mxu0 %v109
    %v205 = vpop.f32.mrb[0].mxu0
    %v206 = vadd.f32 %v44, %v205
    %v207 = vpop.f32.mrb[0].mxu0
    %v208 = vpop.f32.mrb[0].mxu0
    %v209 = vadd.f32 %v44, %v208
    %v210 = vpop.f32.mrb[0].mxu0
    %211 = vdwg.mxu0
    %v212 = vld [vmem:[%s3] sm:$0xf]
    %v213 = vld [vmem:[%s3 + $0x4] sm:$0xf]
    %v214 = vld [vmem:[%s3 + $0x8] sm:$0xf]
    %v215 = vld [vmem:[%s3 + $0xc] sm:$0xf]
    %v216 = vld [vmem:[%s3 + $0x10] sm:$0xf]
    %v217 = vld [vmem:[%s3 + $0x14] sm:$0xf]
    %v218 = vld [vmem:[%s3 + $0x18] sm:$0xf]
    %v219 = vld [vmem:[%s3 + $0x1c] sm:$0xf]
    %v220 = vld [vmem:[%s3 + $0x20] sm:$0xf]
    %v221 = vld [vmem:[%s3 + $0x24] sm:$0xf]
    %v222 = vld [vmem:[%s3 + $0x28] sm:$0xf]
    %v223 = vld [vmem:[%s3 + $0x2c] sm:$0xf]
    %v224 = vld [vmem:[%s3 + $0x30] sm:$0xf]
    %v225 = vld [vmem:[%s3 + $0x34] sm:$0xf]
    %v226 = vld [vmem:[%s3 + $0x38] sm:$0xf]
    %v227 = vld [vmem:[%s3 + $0x3c] sm:$0xf]
    %v228 = vld [vmem:[%s4] sm:$0x3]
    %v245 = vunpack.c.l.b16 %v212
    %v246 = vunpack.c.l.b16 %v213
    %v247 = vunpack.c.l.b16 %v214
    %v248 = vunpack.c.l.b16 %v215
    %v249 = vunpack.c.l.b16 %v216
    %v250 = vunpack.c.l.b16 %v217
    %v251 = vunpack.c.l.b16 %v218
    %v252 = vunpack.c.l.b16 %v219
    %v253 = vunpack.c.l.b16 %v220
    %v254 = vunpack.c.l.b16 %v221
    %v255 = vunpack.c.l.b16 %v222
    %v256 = vunpack.c.l.b16 %v223
    %v257 = vunpack.c.l.b16 %v224
    %v258 = vunpack.c.l.b16 %v225
    %v259 = vunpack.c.l.b16 %v226
    %v260 = vunpack.c.l.b16 %v227
    %v261 = vpack.c.b16 %v246, %v245
    %v262 = vpack.c.b16 %v248, %v247
    %v263 = vpack.c.b16 %v250, %v249
    %v264 = vpack.c.b16 %v252, %v251
    %v265 = vpack.c.b16 %v254, %v253
    %v266 = vpack.c.b16 %v256, %v255
    %v267 = vpack.c.b16 %v258, %v257
    %v268 = vpack.c.b16 %v260, %v259
    %vm269 = vcmask 31744
    %v271 = vsel %vm269, %v261, 0
    %v274 = vsel %vm269, %v262, 0
    %v277 = vsel %vm269, %v263, 0
    %v280 = vsel %vm269, %v264, 0
    %v283 = vsel %vm269, %v265, 0
    %v286 = vsel %vm269, %v266, 0
    %v289 = vsel %vm269, %v267, 0
    %v292 = vsel %vm269, %v268, 0
    %vm294 = vcmask 1041408
    %v296 = vsel %vm294, %v228, 0
    %298 = vmatprep.subr.bf16.mxu0 0
    %299 = vmatpush1.bf16.msra.mxu0 %v296
    %300 = vmatprep.subr.bf16.mxu0 0
    %301 = vmatpush1.bf16.msra.mxu0 0
    %302 = vmatprep.subr.bf16.mxu0 0
    %303 = vmatpush1.bf16.msra.mxu0 0
    %304 = vmatprep.subr.bf16.mxu0 0
    %305 = vmatpush1.bf16.msra.mxu0 0
    %306 = vmatprep.subr.bf16.mxu0 0
    %307 = vmatpush1.bf16.msra.mxu0 0
    %308 = vmatprep.subr.bf16.mxu0 0
    %309 = vmatpush1.bf16.msra.mxu0 0
    %310 = vmatprep.subr.bf16.mxu0 0
    %311 = vmatpush1.bf16.msra.mxu0 0
    %312 = vmatprep.subr.bf16.mxu0 0
    %313 = vmatpush1.bf16.msra.mxu0 0
    %314 = vmatprep.subr.bf16.mxu0 0
    %315 = vmatpush1.bf16.msra.mxu0 0
    %316 = vmatprep.subr.bf16.mxu0 0
    %317 = vmatpush1.bf16.msra.mxu0 0
    %318 = vmatprep.subr.bf16.mxu0 0
    %319 = vmatpush1.bf16.msra.mxu0 0
    %320 = vmatprep.subr.bf16.mxu0 0
    %321 = vmatpush1.bf16.msra.mxu0 0
    %322 = vmatprep.subr.bf16.mxu0 0
    %323 = vmatpush1.bf16.msra.mxu0 0
    %324 = vmatprep.subr.bf16.mxu0 0
    %325 = vmatpush1.bf16.msra.mxu0 0
    %326 = vmatprep.subr.bf16.mxu0 0
    %327 = vmatpush1.bf16.msra.mxu0 0
    %328 = vmatprep.subr.bf16.mxu0 0
    %329 = vmatpush1.bf16.msra.mxu0 0
    %330 = vmatprep.mubr.bf16.mxu0 0
    %331 = vmatmul.mubr.bf16.gmra.mrb[0].mxu0 %v271
    %v332 = vpop.f32.mrb[0].mxu0
    %v333 = vadd.f32 0.0, %v332
    %v334 = vpop.f32.mrb[0].mxu0
    %v335 = vpop.f32.mrb[0].mxu0
    %v336 = vadd.f32 0.0, %v335
    %v337 = vpop.f32.mrb[0].mxu0
    %338 = vmatprep.mubr.bf16.mxu0 0
    %339 = vmatmul.mubr.bf16.gmra.mrb[0].mxu0 %v274
    %v340 = vpop.f32.mrb[0].mxu0
    %v341 = vadd.f32 0.0, %v340
    %v342 = vpop.f32.mrb[0].mxu0
    %v343 = vpop.f32.mrb[0].mxu0
    %v344 = vadd.f32 0.0, %v343
    %v345 = vpop.f32.mrb[0].mxu0
    %346 = vmatprep.mubr.bf16.mxu0 0
    %347 = vmatmul.mubr.bf16.gmra.mrb[0].mxu0 %v277
    %v348 = vpop.f32.mrb[0].mxu0
    %v349 = vadd.f32 0.0, %v348
    %v350 = vpop.f32.mrb[0].mxu0
    %v351 = vpop.f32.mrb[0].mxu0
    %v352 = vadd.f32 0.0, %v351
    %v353 = vpop.f32.mrb[0].mxu0
    %354 = vmatprep.mubr.bf16.mxu0 0
    %355 = vmatmul.mubr.bf16.gmra.mrb[0].mxu0 %v280
    %v356 = vpop.f32.mrb[0].mxu0
    %v357 = vadd.f32 0.0, %v356
    %v358 = vpop.f32.mrb[0].mxu0
    %v359 = vpop.f32.mrb[0].mxu0
    %v360 = vadd.f32 0.0, %v359
    %v361 = vpop.f32.mrb[0].mxu0
    %362 = vmatprep.mubr.bf16.mxu0 0
    %363 = vmatmul.mubr.bf16.gmra.mrb[0].mxu0 %v283
    %v364 = vpop.f32.mrb[0].mxu0
    %v365 = vadd.f32 0.0, %v364
    %v366 = vpop.f32.mrb[0].mxu0
    %v367 = vpop.f32.mrb[0].mxu0
    %v368 = vadd.f32 0.0, %v367
    %v369 = vpop.f32.mrb[0].mxu0
    %370 = vmatprep.mubr.bf16.mxu0 0
    %371 = vmatmul.mubr.bf16.gmra.mrb[0].mxu0 %v286
    %v372 = vpop.f32.mrb[0].mxu0
    %v373 = vadd.f32 0.0, %v372
    %v374 = vpop.f32.mrb[0].mxu0
    %v375 = vpop.f32.mrb[0].mxu0
    %v376 = vadd.f32 0.0, %v375
    %v377 = vpop.f32.mrb[0].mxu0
    %378 = vmatprep.mubr.bf16.mxu0 0
    %379 = vmatmul.mubr.bf16.gmra.mrb[0].mxu0 %v289
    %v380 = vpop.f32.mrb[0].mxu0
    %v381 = vadd.f32 0.0, %v380
    %v382 = vpop.f32.mrb[0].mxu0
    %v383 = vpop.f32.mrb[0].mxu0
    %v384 = vadd.f32 0.0, %v383
    %v385 = vpop.f32.mrb[0].mxu0
    %386 = vmatprep.mubr.bf16.mxu0 0
    %387 = vmatmul.mubr.bf16.gmra.mrb[0].mxu0 %v292
    %v388 = vpop.f32.mrb[0].mxu0
    %v389 = vadd.f32 0.0, %v388
    %v390 = vpop.f32.mrb[0].mxu0
    %v391 = vpop.f32.mrb[0].mxu0
    %v392 = vadd.f32 0.0, %v391
    %v393 = vpop.f32.mrb[0].mxu0
    %394 = vdwg.mxu0
    %v395 = vadd.f32 %v150, %v333
    %v396 = vadd.f32 %v153, %v336
    %v397 = vadd.f32 %v158, %v341
    %v398 = vadd.f32 %v161, %v344
    %v399 = vadd.f32 %v166, %v349
    %v400 = vadd.f32 %v169, %v352
    %v401 = vadd.f32 %v174, %v357
    %v402 = vadd.f32 %v177, %v360
    %v403 = vadd.f32 %v182, %v365
    %v404 = vadd.f32 %v185, %v368
    %v405 = vadd.f32 %v190, %v373
    %v406 = vadd.f32 %v193, %v376
    %v407 = vadd.f32 %v198, %v381
    %v408 = vadd.f32 %v201, %v384
    %v409 = vadd.f32 %v206, %v389
    %v410 = vadd.f32 %v209, %v392
    %v411 = vmax.f32 %v395, 0.0
    %v412 = vmax.f32 %v396, 0.0
    %v413 = vmax.f32 %v397, 0.0
    %v414 = vmax.f32 %v398, 0.0
    %v415 = vmax.f32 %v399, 0.0
    %v416 = vmax.f32 %v400, 0.0
    %v417 = vmax.f32 %v401, 0.0
    %v418 = vmax.f32 %v402, 0.0
    %v419 = vmax.f32 %v403, 0.0
    %v420 = vmax.f32 %v404, 0.0
    %v421 = vmax.f32 %v405, 0.0
    %v422 = vmax.f32 %v406, 0.0
    %v423 = vmax.f32 %v407, 0.0
    %v424 = vmax.f32 %v408, 0.0
    %v425 = vmax.f32 %v409, 0.0
    %v426 = vmax.f32 %v410, 0.0
    %427 = vst [vmem:[#allocation2] sm:$0xff] %v411
    %428 = vst [vmem:[#allocation2 + $0x8] sm:$0xff] %v412
    %429 = vst [vmem:[#allocation2 + $0x10] sm:$0xff] %v413
    %430 = vst [vmem:[#allocation2 + $0x18] sm:$0xff] %v414
    %431 = vst [vmem:[#allocation2 + $0x20] sm:$0xff] %v415
    %432 = vst [vmem:[#allocation2 + $0x28] sm:$0xff] %v416
    %433 = vst [vmem:[#allocation2 + $0x30] sm:$0xff] %v417
    %434 = vst [vmem:[#allocation2 + $0x38] sm:$0xff] %v418
    %435 = vst [vmem:[#allocation2 + $0x40] sm:$0xff] %v419
    %436 = vst [vmem:[#allocation2 + $0x48] sm:$0xff] %v420
    %437 = vst [vmem:[#allocation2 + $0x50] sm:$0xff] %v421
    %438 = vst [vmem:[#allocation2 + $0x58] sm:$0xff] %v422
    %439 = vst [vmem:[#allocation2 + $0x60] sm:$0xff] %v423
    %440 = vst [vmem:[#allocation2 + $0x68] sm:$0xff] %v424
    %441 = vst [vmem:[#allocation2 + $0x70] sm:$0xff] %v425
    %442 = vst [vmem:[#allocation2 + $0x78] sm:$0xff] %v426
    // Predicated region
    $region22: #{bottleneck_forward.5} parent=1 // pred_check
      _
    $region23: #{bottleneck_forward.5} parent=1 // pred_check_branch
      %444 = sbr.rel (0) target = $region25
    $region24: #{bottleneck_forward.5} parent=1 // pred_region
      %s446 = ssub.s32 2048, 2048
      %447 = vsyncadd [#allocation3], %s446
      %s448 = sshll.u32 [#allocation2], 4
      %s449 = int_to_ptr.vmem [resolvable:$true] %s448
      %454 = dma.vmem_to_hbm [thread:$0]  %s449, 2048, %s5, [#allocation3], 128, 128, 8
    $region25: #{bottleneck_forward.5} parent=1 // pred_fallthru
      _
    // Predicated region
    $region26: #{bottleneck_forward.5} parent=1 // pred_check
      _
    $region27: #{bottleneck_forward.5} parent=1 // pred_check_branch
      %456 = sbr.rel (0) target = $region29
    $region28: #{bottleneck_forward.5} parent=1 // pred_region
      %457 = dma.done [#allocation3], 2048
    $region29: #{bottleneck_forward.5} parent=1 // pred_fallthru
      _
    %458 = vsyncpa [#allocation3], 1

</llo_original>
